<compile_context>
chip_gen: v5e
topology: v5e:2x2
jax: 0.10.0
libtpu: 0.0.40
codegen_flags: <defaults>
</compile_context>

<pallas_src>
import functools

import jax
import jax.numpy as jnp
import numpy as np
from jax import lax
from jax.experimental import pallas as pl
from jax.experimental.pallas import tpu as pltpu


def _round_up(v, m):
    return (v + m - 1) // m * m


def _g_kernel(x_ref, wa_ref, ba_ref, wb_ref, bb_ref, gt_ref,
              m_sc, d_sc, acc_sc, *, block_l, l_valid, need_mask):
    """Pass 1: online (flash-style) accumulation of G^T over the L axis.

    x_ref:  (1, block_l, Cp) f32          wa/wb: (Cp, cm_p/cn_p) bf16
    ba/bb:  (1, cm_p/cn_p)  f32           gt_ref: (1, cn_p, cm_p) bf16 (out)
    scratch: m_sc (1, cn_p) f32 running max, d_sc (1, cn_p) f32 running denom,
             acc_sc (cm_p, cn_p) f32 un-normalized G accumulator.
    """
    li = pl.program_id(1)

    @pl.when(li == 0)
    def _():
        m_sc[...] = jnp.full_like(m_sc, -jnp.inf)
        d_sc[...] = jnp.zeros_like(d_sc)
        acc_sc[...] = jnp.zeros_like(acc_sc)

    xb = x_ref[0].astype(jnp.bfloat16)                                  # (bl, Cp)

    # convB for this L tile -> online softmax stats over L (per c_n column).
    b_mat = jnp.dot(xb, wb_ref[...],
                    preferred_element_type=jnp.float32) + bb_ref[...]   # (bl, cn_p)
    m_prev = m_sc[...]
    m_new = jnp.maximum(m_prev, jnp.max(b_mat, axis=0, keepdims=True))  # (1, cn_p)
    alpha = jnp.exp(m_prev - m_new)                                     # (1, cn_p)
    p = jnp.exp(b_mat - m_new)                                          # (bl, cn_p)
    if need_mask:
        rows = li * block_l + lax.broadcasted_iota(jnp.int32, (block_l, 1), 0)
        p = jnp.where(rows < l_valid, p, 0.0)

    # convA for this L tile.
    a = jnp.dot(xb, wa_ref[...],
                preferred_element_type=jnp.float32) + ba_ref[...]       # (bl, cm_p)

    d_sc[...] = d_sc[...] * alpha + jnp.sum(p, axis=0, keepdims=True)
    # acc[m, n] += sum_l a[l, m] * p[l, n]   (previous tiles rescaled by alpha)
    acc_sc[...] = acc_sc[...] * alpha + lax.dot_general(
        a.astype(jnp.bfloat16), p.astype(jnp.bfloat16),
        (((0,), (0,)), ((), ())), preferred_element_type=jnp.float32)
    m_sc[...] = m_new

    @pl.when(li == pl.num_programs(1) - 1)
    def _():
        # Normalize by the L-axis softmax denominator, transpose once here on
        # the tiny (cm_p, cn_p) tile so pass 2 does a plain (L, cn)@(cn, cm) dot.
        g = acc_sc[...] * pl.reciprocal(d_sc[...], approx=True)          # (cm_p, cn_p)
        gt_ref[0] = jnp.transpose(g).astype(gt_ref.dtype)                # (cn_p, cm_p)


def _z_kernel(x_ref, gt_ref, wv_ref, bv_ref, wz_ref, bz_ref, o_ref):
    """Pass 2: attnV = softmax_cn(convV(x)); out = (attnV @ G^T) @ Wz + bz + x.

    x_ref: (1, bl, Cp) f32; gt_ref: (1, cn_p, cm_p) bf16
    wv: (Cp, cn_p) bf16, bv: (1, cn_p) f32 (padded lanes -1e30)
    wz: (cm_p, Cp) bf16, bz: (1, Cp) f32; o_ref: (1, bl, Cp) f32
    """
    x = x_ref[0]                                                        # (bl, Cp) f32
    xb = x.astype(jnp.bfloat16)

    v = jnp.dot(xb, wv_ref[...],
                preferred_element_type=jnp.float32) + bv_ref[...]        # (bl, cn_p)
    ve = jnp.exp(v - jnp.max(v, axis=-1, keepdims=True))
    attn_v = ve * pl.reciprocal(jnp.sum(ve, axis=-1, keepdims=True), approx=True)

    zt = jnp.dot(attn_v.astype(jnp.bfloat16), gt_ref[0],
                 preferred_element_type=jnp.float32)                     # (bl, cm_p)
    out = jnp.dot(zt.astype(jnp.bfloat16), wz_ref[...],
                  preferred_element_type=jnp.float32) + bz_ref[...]       # (bl, Cp)
    o_ref[0] = (out + x).astype(o_ref.dtype)


def double_attention_layer(x, params, k=1, block_l=128):
    """x: (b, c, h, w) NCHW float32.  params: dict of kernel-layout weights."""
    b, c, h, w = x.shape
    c_m = params["wA"].shape[1]
    c_n = params["wB"].shape[1]
    assert b % k == 0
    batch = b // k
    L = k * h * w

    c_p = _round_up(c, 128)
    cm_p = _round_up(c_m, 128)
    cn_p = _round_up(c_n, 128)

    bl = _round_up(min(block_l, _round_up(L, 8)), 8)
    l_pad = _round_up(L, bl)
    num_l = l_pad // bl
    need_mask = l_pad != L

    # NCHW -> (batch, L, C) pixel-major (K outer), channels last; zero-pad.
    # TODO(synk): fuse this HBM layout transform into the kernels via index_map
    # gathers to save a full tensor read+write on bandwidth-limited chips (v5e).
    xg = x.reshape(batch, k, c, h * w).transpose(0, 1, 3, 2).reshape(batch, L, c)
    xg = jnp.pad(xg.astype(jnp.float32), ((0, 0), (0, l_pad - L), (0, c_p - c)))

    def pad2(wt, r, cols):
        return jnp.pad(wt, ((0, r - wt.shape[0]), (0, cols - wt.shape[1])))

    wa = pad2(params["wA"], c_p, cm_p).astype(jnp.bfloat16)
    wb = pad2(params["wB"], c_p, cn_p).astype(jnp.bfloat16)
    wv = pad2(params["wV"], c_p, cn_p).astype(jnp.bfloat16)
    wz = pad2(params["wZ"], cm_p, c_p).astype(jnp.bfloat16)

    ba = jnp.pad(params["bA"].astype(jnp.float32), (0, cm_p - c_m)).reshape(1, cm_p)
    bb = jnp.pad(params["bB"].astype(jnp.float32), (0, cn_p - c_n)).reshape(1, cn_p)
    # Padded c_n lanes must not contribute to the per-pixel softmax over c_n:
    # hugely negative bias -> exp underflows to exactly 0.
    bv = jnp.pad(params["bV"].astype(jnp.float32), (0, cn_p - c_n),
                 constant_values=-1e30).reshape(1, cn_p)
    bz = jnp.pad(params["bZ"].astype(jnp.float32), (0, c_p - c)).reshape(1, c_p)

    # ---- Pass 1: G^T accumulated online over L (reduction axis last) ----
    g_kernel = functools.partial(_g_kernel, block_l=bl, l_valid=L,
                                 need_mask=need_mask)
    gt = pl.pallas_call(
        g_kernel,
        out_shape=jax.ShapeDtypeStruct((batch, cn_p, cm_p), jnp.bfloat16),
        grid_spec=pltpu.PrefetchScalarGridSpec(
            num_scalar_prefetch=0,
            grid=(batch, num_l),
            in_specs=[
                pl.BlockSpec((1, bl, c_p), lambda g, l: (g, l, 0)),   # x tile
                pl.BlockSpec((c_p, cm_p), lambda g, l: (0, 0)),       # wA
                pl.BlockSpec((1, cm_p), lambda g, l: (0, 0)),         # bA
                pl.BlockSpec((c_p, cn_p), lambda g, l: (0, 0)),       # wB
                pl.BlockSpec((1, cn_p), lambda g, l: (0, 0)),         # bB
            ],
            out_specs=pl.BlockSpec((1, cn_p, cm_p), lambda g, l: (g, 0, 0)),
            scratch_shapes=[
                pltpu.VMEM((1, cn_p), jnp.float32),      # running max
                pltpu.VMEM((1, cn_p), jnp.float32),      # running denominator
                pltpu.VMEM((cm_p, cn_p), jnp.float32),   # G accumulator
            ]),
        compiler_params=pltpu.CompilerParams(
            dimension_semantics=("parallel", "arbitrary")),
    )(xg, wa, ba, wb, bb)

    # ---- Pass 2: attnV softmax, read-out, convZ + residual (fully parallel) ----
    out_g = pl.pallas_call(
        _z_kernel,
        out_shape=jax.ShapeDtypeStruct((batch, l_pad, c_p), jnp.float32),
        grid_spec=pltpu.PrefetchScalarGridSpec(
            num_scalar_prefetch=0,
            grid=(batch, num_l),
            in_specs=[
                pl.BlockSpec((1, bl, c_p), lambda g, l: (g, l, 0)),     # x tile
                pl.BlockSpec((1, cn_p, cm_p), lambda g, l: (g, 0, 0)),  # G^T
                pl.BlockSpec((c_p, cn_p), lambda g, l: (0, 0)),         # wV
                pl.BlockSpec((1, cn_p), lambda g, l: (0, 0)),           # bV
                pl.BlockSpec((cm_p, c_p), lambda g, l: (0, 0)),         # wZ
                pl.BlockSpec((1, c_p), lambda g, l: (0, 0)),            # bZ
            ],
            out_specs=pl.BlockSpec((1, bl, c_p), lambda g, l: (g, l, 0)),
        ),
        compiler_params=pltpu.CompilerParams(
            dimension_semantics=("parallel", "parallel")),
    )(xg, gt, wv, bv, wz, bz)

    # (batch, L_pad, C_pad) -> slice padding -> (b, c, h, w)
    out = out_g[:, :L, :c]
    out = (out.reshape(batch, k, h * w, c)
              .transpose(0, 1, 3, 2)
              .reshape(b, c, h, w))
    return out


def reference_double_attention_layer(x, params, k=1):
    """Pure-JAX port of the PyTorch forward (for correctness checking)."""
    b, c, h, w = x.shape
    c_m = params["wA"].shape[1]
    c_n = params["wB"].shape[1]
    batch = b // k

    def conv1x1(inp, wt, bias):  # wt: (in, out)
        return jnp.einsum('bihw,io->bohw', inp, wt) + bias[None, :, None, None]

    A = conv1x1(x, params["wA"], params["bA"])
    B = conv1x1(x, params["wB"], params["bB"])
    V = conv1x1(x, params["wV"], params["bV"])

    tmpA = A.reshape(batch, k, c_m, h * w).transpose(0, 2, 1, 3).reshape(batch, c_m, k * h * w)
    tmpB = B.reshape(batch, k, c_n, h * w).transpose(0, 2, 1, 3).reshape(batch * c_n, k * h * w)
    tmpV = V.reshape(batch, k, c_n, h * w).transpose(0, 1, 3, 2).reshape(b * h * w, c_n)

    softmaxB = jax.nn.softmax(tmpB, -1).reshape(batch, c_n, k * h * w).transpose(0, 2, 1)
    softmaxV = jax.nn.softmax(tmpV, -1).reshape(batch, k * h * w, c_n).transpose(0, 2, 1)

    tmpG = jnp.einsum('bml,bln->bmn', tmpA, softmaxB)
    tmpZ = jnp.einsum('bmn,bnl->bml', tmpG, softmaxV)
    tmpZ = tmpZ.reshape(batch, c_m, k, h * w).transpose(0, 2, 1, 3).reshape(b, c_m, h, w)
    out = conv1x1(tmpZ, params["wZ"], params["bZ"])
    return out + x


def init_params(key, in_channels, c_m=None, c_n=None):
    c_m = c_m if c_m is not None else in_channels // 4
    c_n = c_n if c_n is not None else in_channels // 4
    ks = jax.random.split(key, 8)
    scale = 0.1
    # Weights stored kernel-layout: (in, out). (PyTorch conv weight is (out, in, 1, 1).)
    return {
        "wA": scale * jax.random.normal(ks[0], (in_channels, c_m), jnp.float32),
        "bA": scale * jax.random.normal(ks[1], (c_m,), jnp.float32),
        "wB": scale * jax.random.normal(ks[2], (in_channels, c_n), jnp.float32),
        "bB": scale * jax.random.normal(ks[3], (c_n,), jnp.float32),
        "wV": scale * jax.random.normal(ks[4], (in_channels, c_n), jnp.float32),
        "bV": scale * jax.random.normal(ks[5], (c_n,), jnp.float32),
        "wZ": scale * jax.random.normal(ks[6], (c_m, in_channels), jnp.float32),
        "bZ": scale * jax.random.normal(ks[7], (in_channels,), jnp.float32),
    }


if __name__ == "__main__":
    key = jax.random.PRNGKey(0)
    k_x, k_p = jax.random.split(key)

    B, C, H, W = 2, 16, 16, 16   # in_channels=16 -> c_m = c_n = 4, K = 1, L = 256
    K = 1
    x = jax.random.normal(k_x, (B, C, H, W), jnp.float32)
    params = init_params(k_p, C)

    run = jax.jit(functools.partial(double_attention_layer, k=K, block_l=128))
    out = jax.block_until_ready(run(x, params))

    ref = jax.block_until_ready(reference_double_attention_layer(x, params, k=K))

    assert out.shape == (B, C, H, W)
    # bf16 matmul operands + approx reciprocals -> loosen tolerance vs pure f32.
    np.testing.assert_allclose(np.asarray(out), np.asarray(ref), rtol=2e-2, atol=2e-2)
    print("KERNEL_OK")
</pallas_src>

<mosaic_0001>
module attributes {stable_mosaic.version = 11 : i64} {
  func.func @_z_kernel(%arg0: i32, %arg1: i32, %arg2: memref<1x128x128xf32, #tpu.memory_space<vmem>>, %arg3: memref<1x128x128xbf16, #tpu.memory_space<vmem>>, %arg4: memref<128x128xbf16, #tpu.memory_space<vmem>>, %arg5: memref<1x128xf32, #tpu.memory_space<vmem>>, %arg6: memref<128x128xbf16, #tpu.memory_space<vmem>>, %arg7: memref<1x128xf32, #tpu.memory_space<vmem>>, %arg8: memref<1x128x128xf32, #tpu.memory_space<vmem>>) attributes {dimension_semantics = [#tpu.dimension_semantics<parallel>, #tpu.dimension_semantics<parallel>], iteration_bounds = array<i64: 2, 2>, scalar_prefetch = 0 : i64, scratch_operands = 0 : i64, tpu.core_type = #tpu.core_type<tc>, window_params = [{transform_indices = @transform_0, window_bounds = array<i64: 1, 128, 128>}, {transform_indices = @transform_1, window_bounds = array<i64: 1, 128, 128>}, {pipeline_mode = #tpu.pipeline_mode<synchronous>, transform_indices = @transform_2, window_bounds = array<i64: 128, 128>}, {pipeline_mode = #tpu.pipeline_mode<synchronous>, transform_indices = @transform_3, window_bounds = array<i64: 1, 128>}, {pipeline_mode = #tpu.pipeline_mode<synchronous>, transform_indices = @transform_4, window_bounds = array<i64: 128, 128>}, {pipeline_mode = #tpu.pipeline_mode<synchronous>, transform_indices = @transform_5, window_bounds = array<i64: 1, 128>}, {transform_indices = @transform_6, window_bounds = array<i64: 1, 128, 128>}]} {
    %c0 = arith.constant 0 : index
    %c0_0 = arith.constant 0 : index
    %c0_1 = arith.constant 0 : index
    %0 = vector.load %arg2[%c0, %c0_0, %c0_1] : memref<1x128x128xf32, #tpu.memory_space<vmem>>, vector<1x128x128xf32>
    %1 = vector.shape_cast %0 : vector<1x128x128xf32> to vector<128x128xf32>
    %2 = arith.truncf %1 : vector<128x128xf32> to vector<128x128xbf16>
    %c0_2 = arith.constant 0 : index
    %c0_3 = arith.constant 0 : index
    %3 = vector.load %arg4[%c0_2, %c0_3] : memref<128x128xbf16, #tpu.memory_space<vmem>>, vector<128x128xbf16>
    %cst = arith.constant dense<0.000000e+00> : vector<128x128xf32>
    %4 = tpu.matmul %2, %3, %cst {dimension_numbers = #tpu.dot_dimension_numbers<[1], [0], [0], [1], [0, 0, 1, 1], [], []>} : vector<128x128xbf16>, vector<128x128xbf16>, vector<128x128xf32> -> vector<128x128xf32>
    %c0_4 = arith.constant 0 : index
    %c0_5 = arith.constant 0 : index
    %5 = vector.load %arg5[%c0_4, %c0_5] : memref<1x128xf32, #tpu.memory_space<vmem>>, vector<1x128xf32>
    %6 = vector.broadcast %5 : vector<1x128xf32> to vector<128x128xf32>
    %7 = arith.addf %4, %6 : vector<128x128xf32>
    %cst_6 = arith.constant dense<0xFF800000> : vector<128xf32>
    %8 = vector.multi_reduction <maximumf>, %7, %cst_6 [1] : vector<128x128xf32> to vector<128xf32>
    %9 = vector.shape_cast %8 : vector<128xf32> to vector<128x1xf32>
    %10 = vector.broadcast %9 : vector<128x1xf32> to vector<128x128xf32>
    %11 = arith.subf %7, %10 : vector<128x128xf32>
    %12 = math.exp %11 : vector<128x128xf32>
    %cst_7 = arith.constant dense<0.000000e+00> : vector<128xf32>
    %13 = vector.multi_reduction <add>, %12, %cst_7 [1] : vector<128x128xf32> to vector<128xf32>
    %14 = vector.shape_cast %13 : vector<128xf32> to vector<128x1xf32>
    %15 = tpu.reciprocal %14 {approx = true} : vector<128x1xf32> -> vector<128x1xf32>
    %16 = vector.broadcast %15 : vector<128x1xf32> to vector<128x128xf32>
    %17 = arith.mulf %12, %16 : vector<128x128xf32>
    %18 = arith.truncf %17 : vector<128x128xf32> to vector<128x128xbf16>
    %c0_8 = arith.constant 0 : index
    %c0_9 = arith.constant 0 : index
    %c0_10 = arith.constant 0 : index
    %19 = vector.load %arg3[%c0_8, %c0_9, %c0_10] : memref<1x128x128xbf16, #tpu.memory_space<vmem>>, vector<1x128x128xbf16>
    %20 = vector.shape_cast %19 : vector<1x128x128xbf16> to vector<128x128xbf16>
    %cst_11 = arith.constant dense<0.000000e+00> : vector<128x128xf32>
    %21 = tpu.matmul %18, %20, %cst_11 {dimension_numbers = #tpu.dot_dimension_numbers<[1], [0], [0], [1], [0, 0, 1, 1], [], []>} : vector<128x128xbf16>, vector<128x128xbf16>, vector<128x128xf32> -> vector<128x128xf32>
    %22 = arith.truncf %21 : vector<128x128xf32> to vector<128x128xbf16>
    %c0_12 = arith.constant 0 : index
    %c0_13 = arith.constant 0 : index
    %23 = vector.load %arg6[%c0_12, %c0_13] : memref<128x128xbf16, #tpu.memory_space<vmem>>, vector<128x128xbf16>
    %cst_14 = arith.constant dense<0.000000e+00> : vector<128x128xf32>
    %24 = tpu.matmul %22, %23, %cst_14 {dimension_numbers = #tpu.dot_dimension_numbers<[1], [0], [0], [1], [0, 0, 1, 1], [], []>} : vector<128x128xbf16>, vector<128x128xbf16>, vector<128x128xf32> -> vector<128x128xf32>
    %c0_15 = arith.constant 0 : index
    %c0_16 = arith.constant 0 : index
    %25 = vector.load %arg7[%c0_15, %c0_16] : memref<1x128xf32, #tpu.memory_space<vmem>>, vector<1x128xf32>
    %26 = vector.broadcast %25 : vector<1x128xf32> to vector<128x128xf32>
    %27 = arith.addf %24, %26 : vector<128x128xf32>
    %28 = arith.addf %27, %1 : vector<128x128xf32>
    %c0_17 = arith.constant 0 : index
    %c0_18 = arith.constant 0 : index
    %c0_19 = arith.constant 0 : index
    %29 = vector.load %arg8[%c0_17, %c0_18, %c0_19] : memref<1x128x128xf32, #tpu.memory_space<vmem>>, vector<1x128x128xf32>
    %30 = vector.shape_cast %29 : vector<1x128x128xf32> to vector<128x128xf32>
    %31 = vector.shape_cast %28 : vector<128x128xf32> to vector<1x128x128xf32>
    tpu.vector_store %arg8[%c0_17, %c0_18, %c0_19], %31 {strides = array<i32>} : memref<1x128x128xf32, #tpu.memory_space<vmem>>, vector<1x128x128xf32>,
    return
  }
  func.func @transform_0(%arg0: i32, %arg1: i32) -> (i32, i32, i32) {
    %c0_i32 = arith.constant 0 : i32
    %c0_i32_0 = arith.constant 0 : i32
    return %arg0, %arg1, %c0_i32 : i32, i32, i32
  }
  func.func @transform_1(%arg0: i32, %arg1: i32) -> (i32, i32, i32) {
    %c0_i32 = arith.constant 0 : i32
    %c0_i32_0 = arith.constant 0 : i32
    %c0_i32_1 = arith.constant 0 : i32
    return %arg0, %c0_i32, %c0_i32_0 : i32, i32, i32
  }
  func.func @transform_2(%arg0: i32, %arg1: i32) -> (i32, i32) {
    %c0_i32 = arith.constant 0 : i32
    %c0_i32_0 = arith.constant 0 : i32
    %c0_i32_1 = arith.constant 0 : i32
    return %c0_i32, %c0_i32_0 : i32, i32
  }
  func.func @transform_3(%arg0: i32, %arg1: i32) -> (i32, i32) {
    %c0_i32 = arith.constant 0 : i32
    %c0_i32_0 = arith.constant 0 : i32
    %c0_i32_1 = arith.constant 0 : i32
    return %c0_i32, %c0_i32_0 : i32, i32
  }
  func.func @transform_4(%arg0: i32, %arg1: i32) -> (i32, i32) {
    %c0_i32 = arith.constant 0 : i32
    %c0_i32_0 = arith.constant 0 : i32
    %c0_i32_1 = arith.constant 0 : i32
    return %c0_i32, %c0_i32_0 : i32, i32
  }
  func.func @transform_5(%arg0: i32, %arg1: i32) -> (i32, i32) {
    %c0_i32 = arith.constant 0 : i32
    %c0_i32_0 = arith.constant 0 : i32
    %c0_i32_1 = arith.constant 0 : i32
    return %c0_i32, %c0_i32_0 : i32, i32
  }
  func.func @transform_6(%arg0: i32, %arg1: i32) -> (i32, i32, i32) {
    %c0_i32 = arith.constant 0 : i32
    %c0_i32_0 = arith.constant 0 : i32
    return %arg0, %arg1, %c0_i32 : i32, i32, i32
  }
}

module attributes {stable_mosaic.version = 11 : i64} {
  func.func @_g_kernel(%arg0: i32, %arg1: i32, %arg2: memref<1x128x128xf32, #tpu.memory_space<vmem>>, %arg3: memref<128x128xbf16, #tpu.memory_space<vmem>>, %arg4: memref<1x128xf32, #tpu.memory_space<vmem>>, %arg5: memref<128x128xbf16, #tpu.memory_space<vmem>>, %arg6: memref<1x128xf32, #tpu.memory_space<vmem>>, %arg7: memref<1x128x128xbf16, #tpu.memory_space<vmem>>, %arg8: memref<1x128xf32, #tpu.memory_space<vmem>>, %arg9: memref<1x128xf32, #tpu.memory_space<vmem>>, %arg10: memref<128x128xf32, #tpu.memory_space<vmem>>) attributes {dimension_semantics = [#tpu.dimension_semantics<parallel>, #tpu.dimension_semantics<arbitrary>], iteration_bounds = array<i64: 2, 2>, scalar_prefetch = 0 : i64, scratch_operands = 3 : i64, tpu.core_type = #tpu.core_type<tc>, window_params = [{transform_indices = @transform_0, window_bounds = array<i64: 1, 128, 128>}, {pipeline_mode = #tpu.pipeline_mode<synchronous>, transform_indices = @transform_1, window_bounds = array<i64: 128, 128>}, {pipeline_mode = #tpu.pipeline_mode<synchronous>, transform_indices = @transform_2, window_bounds = array<i64: 1, 128>}, {pipeline_mode = #tpu.pipeline_mode<synchronous>, transform_indices = @transform_3, window_bounds = array<i64: 128, 128>}, {pipeline_mode = #tpu.pipeline_mode<synchronous>, transform_indices = @transform_4, window_bounds = array<i64: 1, 128>}, {transform_indices = @transform_5, window_bounds = array<i64: 1, 128, 128>}]} {
    %c0_i32 = arith.constant 0 : i32
    %0 = arith.cmpi eq, %arg1, %c0_i32 : i32
    %1 = arith.extui %0 : i1 to i32
    %c0_i32_0 = arith.constant 0 : i32
    %2 = arith.cmpi ne, %1, %c0_i32_0 : i32
    scf.if %2 {
      %cst_28 = arith.constant 0xFF800000 : f32
      %43 = vector.broadcast %cst_28 : f32 to vector<1x128xf32>
      %c0_29 = arith.constant 0 : index
      %c0_30 = arith.constant 0 : index
      %44 = vector.load %arg8[%c0_29, %c0_30] : memref<1x128xf32, #tpu.memory_space<vmem>>, vector<1x128xf32>
      tpu.vector_store %arg8[%c0_29, %c0_30], %43 {strides = array<i32>} : memref<1x128xf32, #tpu.memory_space<vmem>>, vector<1x128xf32>,
      %cst_31 = arith.constant 0.000000e+00 : f32
      %45 = vector.broadcast %cst_31 : f32 to vector<1x128xf32>
      %c0_32 = arith.constant 0 : index
      %c0_33 = arith.constant 0 : index
      %46 = vector.load %arg9[%c0_32, %c0_33] : memref<1x128xf32, #tpu.memory_space<vmem>>, vector<1x128xf32>
      tpu.vector_store %arg9[%c0_32, %c0_33], %45 {strides = array<i32>} : memref<1x128xf32, #tpu.memory_space<vmem>>, vector<1x128xf32>,
      %cst_34 = arith.constant 0.000000e+00 : f32
      %47 = vector.broadcast %cst_34 : f32 to vector<128x128xf32>
      %c0_35 = arith.constant 0 : index
      %c0_36 = arith.constant 0 : index
      %48 = vector.load %arg10[%c0_35, %c0_36] : memref<128x128xf32, #tpu.memory_space<vmem>>, vector<128x128xf32>
      tpu.vector_store %arg10[%c0_35, %c0_36], %47 {strides = array<i32>} : memref<128x128xf32, #tpu.memory_space<vmem>>, vector<128x128xf32>,
    } else {
    }
    %c0 = arith.constant 0 : index
    %c0_1 = arith.constant 0 : index
    %c0_2 = arith.constant 0 : index
    %3 = vector.load %arg2[%c0, %c0_1, %c0_2] : memref<1x128x128xf32, #tpu.memory_space<vmem>>, vector<1x128x128xf32>
    %4 = vector.shape_cast %3 : vector<1x128x128xf32> to vector<128x128xf32>
    %5 = arith.truncf %4 : vector<128x128xf32> to vector<128x128xbf16>
    %c0_3 = arith.constant 0 : index
    %c0_4 = arith.constant 0 : index
    %6 = vector.load %arg5[%c0_3, %c0_4] : memref<128x128xbf16, #tpu.memory_space<vmem>>, vector<128x128xbf16>
    %cst = arith.constant dense<0.000000e+00> : vector<128x128xf32>
    %7 = tpu.matmul %5, %6, %cst {dimension_numbers = #tpu.dot_dimension_numbers<[1], [0], [0], [1], [0, 0, 1, 1], [], []>} : vector<128x128xbf16>, vector<128x128xbf16>, vector<128x128xf32> -> vector<128x128xf32>
    %c0_5 = arith.constant 0 : index
    %c0_6 = arith.constant 0 : index
    %8 = vector.load %arg6[%c0_5, %c0_6] : memref<1x128xf32, #tpu.memory_space<vmem>>, vector<1x128xf32>
    %9 = vector.broadcast %8 : vector<1x128xf32> to vector<128x128xf32>
    %10 = arith.addf %7, %9 : vector<128x128xf32>
    %c0_7 = arith.constant 0 : index
    %c0_8 = arith.constant 0 : index
    %11 = vector.load %arg8[%c0_7, %c0_8] : memref<1x128xf32, #tpu.memory_space<vmem>>, vector<1x128xf32>
    %cst_9 = arith.constant dense<0xFF800000> : vector<128xf32>
    %12 = vector.multi_reduction <maximumf>, %10, %cst_9 [0] : vector<128x128xf32> to vector<128xf32>
    %13 = vector.shape_cast %12 : vector<128xf32> to vector<1x128xf32>
    %14 = arith.maximumf %11, %13 : vector<1x128xf32>
    %15 = arith.subf %11, %14 : vector<1x128xf32>
    %16 = math.exp %15 : vector<1x128xf32>
    %17 = vector.broadcast %14 : vector<1x128xf32> to vector<128x128xf32>
    %18 = arith.subf %10, %17 : vector<128x128xf32>
    %19 = math.exp %18 : vector<128x128xf32>
    %c0_10 = arith.constant 0 : index
    %c0_11 = arith.constant 0 : index
    %20 = vector.load %arg3[%c0_10, %c0_11] : memref<128x128xbf16, #tpu.memory_space<vmem>>, vector<128x128xbf16>
    %cst_12 = arith.constant dense<0.000000e+00> : vector<128x128xf32>
    %21 = tpu.matmul %5, %20, %cst_12 {dimension_numbers = #tpu.dot_dimension_numbers<[1], [0], [0], [1], [0, 0, 1, 1], [], []>} : vector<128x128xbf16>, vector<128x128xbf16>, vector<128x128xf32> -> vector<128x128xf32>
    %c0_13 = arith.constant 0 : index
    %c0_14 = arith.constant 0 : index
    %22 = vector.load %arg4[%c0_13, %c0_14] : memref<1x128xf32, #tpu.memory_space<vmem>>, vector<1x128xf32>
    %23 = vector.broadcast %22 : vector<1x128xf32> to vector<128x128xf32>
    %24 = arith.addf %21, %23 : vector<128x128xf32>
    %c0_15 = arith.constant 0 : index
    %c0_16 = arith.constant 0 : index
    %25 = vector.load %arg9[%c0_15, %c0_16] : memref<1x128xf32, #tpu.memory_space<vmem>>, vector<1x128xf32>
    %26 = arith.mulf %25, %16 : vector<1x128xf32>
    %cst_17 = arith.constant dense<0.000000e+00> : vector<128xf32>
    %27 = vector.multi_reduction <add>, %19, %cst_17 [0] : vector<128x128xf32> to vector<128xf32>
    %28 = vector.shape_cast %27 : vector<128xf32> to vector<1x128xf32>
    %29 = arith.addf %26, %28 : vector<1x128xf32>
    %c0_18 = arith.constant 0 : index
    %c0_19 = arith.constant 0 : index
    %30 = vector.load %arg9[%c0_18, %c0_19] : memref<1x128xf32, #tpu.memory_space<vmem>>, vector<1x128xf32>
    tpu.vector_store %arg9[%c0_18, %c0_19], %29 {strides = array<i32>} : memref<1x128xf32, #tpu.memory_space<vmem>>, vector<1x128xf32>,
    %c0_20 = arith.constant 0 : index
    %c0_21 = arith.constant 0 : index
    %31 = vector.load %arg10[%c0_20, %c0_21] : memref<128x128xf32, #tpu.memory_space<vmem>>, vector<128x128xf32>
    %32 = vector.broadcast %16 : vector<1x128xf32> to vector<128x128xf32>
    %33 = arith.mulf %31, %32 : vector<128x128xf32>
    %34 = arith.truncf %24 : vector<128x128xf32> to vector<128x128xbf16>
    %35 = arith.truncf %19 : vector<128x128xf32> to vector<128x128xbf16>
    %cst_22 = arith.constant dense<0.000000e+00> : vector<128x128xf32>
    %36 = tpu.matmul %34, %35, %cst_22 {dimension_numbers = #tpu.dot_dimension_numbers<[0], [0], [1], [1], [0, 1, 1, 1], [], []>} : vector<128x128xbf16>, vector<128x128xbf16>, vector<128x128xf32> -> vector<128x128xf32>
    %37 = arith.addf %33, %36 : vector<128x128xf32>
    %c0_23 = arith.constant 0 : index
    %c0_24 = arith.constant 0 : index
    %38 = vector.load %arg10[%c0_23, %c0_24] : memref<128x128xf32, #tpu.memory_space<vmem>>, vector<128x128xf32>
    tpu.vector_store %arg10[%c0_23, %c0_24], %37 {strides = array<i32>} : memref<128x128xf32, #tpu.memory_space<vmem>>, vector<128x128xf32>,
    %c0_25 = arith.constant 0 : index
    %c0_26 = arith.constant 0 : index
    %39 = vector.load %arg8[%c0_25, %c0_26] : memref<1x128xf32, #tpu.memory_space<vmem>>, vector<1x128xf32>
    tpu.vector_store %arg8[%c0_25, %c0_26], %14 {strides = array<i32>} : memref<1x128xf32, #tpu.memory_space<vmem>>, vector<1x128xf32>,
    %c1_i32 = arith.constant 1 : i32
    %40 = arith.cmpi eq, %arg1, %c1_i32 : i32
    %41 = arith.extui %40 : i1 to i32
    %c0_i32_27 = arith.constant 0 : i32
    %42 = arith.cmpi ne, %41, %c0_i32_27 : i32
    scf.if %42 {
      %c0_28 = arith.constant 0 : index
      %c0_29 = arith.constant 0 : index
      %43 = vector.load %arg10[%c0_28, %c0_29] : memref<128x128xf32, #tpu.memory_space<vmem>>, vector<128x128xf32>
      %c0_30 = arith.constant 0 : index
      %c0_31 = arith.constant 0 : index
      %44 = vector.load %arg9[%c0_30, %c0_31] : memref<1x128xf32, #tpu.memory_space<vmem>>, vector<1x128xf32>
      %45 = tpu.reciprocal %44 {approx = true} : vector<1x128xf32> -> vector<1x128xf32>
      %46 = vector.broadcast %45 : vector<1x128xf32> to vector<128x128xf32>
      %47 = arith.mulf %43, %46 : vector<128x128xf32>
      %48 = tpu.transpose %47, [1, 0] : vector<128x128xf32> -> vector<128x128xf32>
      %49 = arith.truncf %48 : vector<128x128xf32> to vector<128x128xbf16>
      %c0_32 = arith.constant 0 : index
      %c0_33 = arith.constant 0 : index
      %c0_34 = arith.constant 0 : index
      %50 = vector.load %arg7[%c0_32, %c0_33, %c0_34] : memref<1x128x128xbf16, #tpu.memory_space<vmem>>, vector<1x128x128xbf16>
      %51 = vector.shape_cast %50 : vector<1x128x128xbf16> to vector<128x128xbf16>
      %52 = vector.shape_cast %49 : vector<128x128xbf16> to vector<1x128x128xbf16>
      tpu.vector_store %arg7[%c0_32, %c0_33, %c0_34], %52 {strides = array<i32>} : memref<1x128x128xbf16, #tpu.memory_space<vmem>>, vector<1x128x128xbf16>,
    } else {
    }
    return
  }
  func.func @transform_0(%arg0: i32, %arg1: i32) -> (i32, i32, i32) {
    %c0_i32 = arith.constant 0 : i32
    %c0_i32_0 = arith.constant 0 : i32
    return %arg0, %arg1, %c0_i32 : i32, i32, i32
  }
  func.func @transform_1(%arg0: i32, %arg1: i32) -> (i32, i32) {
    %c0_i32 = arith.constant 0 : i32
    %c0_i32_0 = arith.constant 0 : i32
    %c0_i32_1 = arith.constant 0 : i32
    return %c0_i32, %c0_i32_0 : i32, i32
  }
  func.func @transform_2(%arg0: i32, %arg1: i32) -> (i32, i32) {
    %c0_i32 = arith.constant 0 : i32
    %c0_i32_0 = arith.constant 0 : i32
    %c0_i32_1 = arith.constant 0 : i32
    return %c0_i32, %c0_i32_0 : i32, i32
  }
  func.func @transform_3(%arg0: i32, %arg1: i32) -> (i32, i32) {
    %c0_i32 = arith.constant 0 : i32
    %c0_i32_0 = arith.constant 0 : i32
    %c0_i32_1 = arith.constant 0 : i32
    return %c0_i32, %c0_i32_0 : i32, i32
  }
  func.func @transform_4(%arg0: i32, %arg1: i32) -> (i32, i32) {
    %c0_i32 = arith.constant 0 : i32
    %c0_i32_0 = arith.constant 0 : i32
    %c0_i32_1 = arith.constant 0 : i32
    return %c0_i32, %c0_i32_0 : i32, i32
  }
  func.func @transform_5(%arg0: i32, %arg1: i32) -> (i32, i32, i32) {
    %c0_i32 = arith.constant 0 : i32
    %c0_i32_0 = arith.constant 0 : i32
    %c0_i32_1 = arith.constant 0 : i32
    return %arg0, %c0_i32, %c0_i32_0 : i32, i32, i32
  }
}

</mosaic_0001>

<llo_original>
// kernel: double_attention_layer.3
$region0: #{double_attention_layer.3}
  #allocation0 [shape = 'u32[]', space=smem, size = 0x4, offset = 0x4, fixed_abs, tag = 'smem constant byte address 0x4 - core index']
  #allocation1 [shape = 'u32[72,128]{1,0:T(1,128)}', space=vmem, size = 0x9000, scoped, tag = 'internal scratch']
  %s0 = inlined_call_operand.vmem [shape: f32[2,256,128], index: 0, kind: input, shape index: {}]
  %s1 = inlined_call_operand.vmem [shape: bf16[2,128,128], index: 1, kind: input, shape index: {}]
  %s2 = inlined_call_operand.vmem [shape: bf16[128,128], index: 2, kind: input, shape index: {}]
  %s3 = inlined_call_operand.vmem [shape: f32[1,128], index: 3, kind: input, shape index: {}]
  %s4 = inlined_call_operand.vmem [shape: bf16[128,128], index: 4, kind: input, shape index: {}]
  %s5 = inlined_call_operand.vmem [shape: f32[1,128], index: 5, kind: input, shape index: {}]
  %s6 = inlined_call_operand.vmem [shape: f32[2,256,128], index: 6, kind: output, shape index: {}]
  %s7 = sld [smem:[#allocation0]]
  $region57: #{double_attention_layer.3} parent=0
    _
  %s9 = ssub.s32 1, %s7
  %s10 = scalar_select 0, %s9, %s7
  loop: start=0, step=1, limit=6
  $region2: #{double_attention_layer.3} parent=0 // loop_pre_header
    _
  $region3: #{double_attention_layer.3} parent=0 // loop_header
    %s12 = sphi 0, %s16
    %p13 = scmp.ge.s32.totalorder %s12, 6
    %s19 = sphi 0, %s31
    %s20 = sphi 0, %s27
    %s21 = sphi 0, %s19
    %s22 = sphi 0, %s20
    %s23 = sphi 0, %s21
    %s24 = sphi 0, %s22
    %s36 = sphi 0, %s38
    %s39 = sphi 0, %s36
    %s40 = sphi 0, %s39
    %s56 = sphi 0, %s40
    %s62 = sphi 0, %s64
    %s65 = sphi 0, %s62
    %s66 = sphi 0, %s65
    %s82 = sphi 0, %s66
    %s86 = sphi 0, %s86
    %s88 = sphi 0, %s86
    %s89 = sphi 0, %s88
    %s103 = sphi 0, %s89
    %s107 = sphi 0, %s107
    %s109 = sphi 0, %s107
    %s110 = sphi 0, %s109
    %s124 = sphi 0, %s110
    %s128 = sphi 0, %s128
    %s130 = sphi 0, %s128
    %s131 = sphi 0, %s130
    %s145 = sphi 0, %s131
    %s149 = sphi 0, %s149
    %s151 = sphi 0, %s149
    %s152 = sphi 0, %s151
    %s166 = sphi 0, %s152
    %s174 = sphi 0, %s176
    %s177 = sphi 0, %s174
    %s178 = sphi 0, %s177
    %s194 = sphi 0, %s178
  $region4: #{double_attention_layer.3} parent=0 // loop_header_branch
    %15 = sbr.rel (%p13) target = $region8
  $region5: #{double_attention_layer.3} parent=0 // loop_body
    %s17 = ssub.s32 %s12, 1
    %s18 = ssub.s32 %s12, 2
    %s25 = sadd.s32 1, %s20
    %p26 = scmp.ge.s32.totalorder %s25, 2
    %s27 = scalar_select %p26, 0, %s25
    %s28 = sadd.s32 1, %s19
    %s29 = scalar_select %p26, %s28, %s19
    %p30 = scmp.ge.s32.totalorder %s29, 2
    %s31 = scalar_select %p30, 0, %s29
    %s32 = ssub.s32 %s19, %s31
    %s33 = ssub.s32 %s20, %s27
    %s34 = sor.u32 %s32, %s33
    %p35 = scmp.eq.s32.totalorder %s34, 0
    %s37 = sadd.s32 %s36, 1
    %s38 = scalar_select %p35, %s36, %s37
    %p41 = pneg %p35
    %p42 = scmp.eq.s32.totalorder %s12, 3
    %p43 = por %p41, %p42
    %p44 = scmp.ne.s32.totalorder %s36, %s39
    %p45 = scmp.eq.s32.totalorder %s12, 0
    %p46 = por %p44, %p45
    %p47 = scmp.ne.s32.totalorder %s36, %s39
    %p48 = scmp.eq.s32.totalorder %s17, 3
    %p49 = por %p47, %p48
    %p50 = scmp.ne.s32.totalorder %s39, %s40
    %p51 = scmp.eq.s32.totalorder %s17, 0
    %p52 = por %p50, %p51
    %p53 = scmp.ne.s32.totalorder %s39, %s40
    %p54 = scmp.eq.s32.totalorder %s18, 3
    %p55 = por %p53, %p54
    %p57 = scmp.ne.s32.totalorder %s40, %s56
    %p58 = scmp.eq.s32.totalorder %s18, 0
    %p59 = por %p57, %p58
    %s60 = ssub.s32 %s19, %s31
    %p61 = scmp.eq.s32.totalorder %s60, 0
    %s63 = sadd.s32 %s62, 1
    %s64 = scalar_select %p61, %s62, %s63
    %p67 = pneg %p61
    %p68 = scmp.eq.s32.totalorder %s12, 3
    %p69 = por %p67, %p68
    %p70 = scmp.ne.s32.totalorder %s62, %s65
    %p71 = scmp.eq.s32.totalorder %s12, 0
    %p72 = por %p70, %p71
    %p73 = scmp.ne.s32.totalorder %s62, %s65
    %p74 = scmp.eq.s32.totalorder %s17, 3
    %p75 = por %p73, %p74
    %p76 = scmp.ne.s32.totalorder %s65, %s66
    %p77 = scmp.eq.s32.totalorder %s17, 0
    %p78 = por %p76, %p77
    %p79 = scmp.ne.s32.totalorder %s65, %s66
    %p80 = scmp.eq.s32.totalorder %s18, 3
    %p81 = por %p79, %p80
    %p83 = scmp.ne.s32.totalorder %s66, %s82
    %p84 = scmp.eq.s32.totalorder %s18, 0
    %p85 = por %p83, %p84
    %s87 = sadd.s32 %s86, 1
    %p90 = scmp.eq.s32.totalorder %s12, 3
    %p91 = scmp.ne.s32.totalorder %s86, %s88
    %p92 = scmp.eq.s32.totalorder %s12, 0
    %p93 = por %p91, %p92
    %p94 = scmp.ne.s32.totalorder %s86, %s88
    %p95 = scmp.eq.s32.totalorder %s17, 3
    %p96 = por %p94, %p95
    %p97 = scmp.ne.s32.totalorder %s88, %s89
    %p98 = scmp.eq.s32.totalorder %s17, 0
    %p99 = por %p97, %p98
    %p100 = scmp.ne.s32.totalorder %s88, %s89
    %p101 = scmp.eq.s32.totalorder %s18, 3
    %p102 = por %p100, %p101
    %p104 = scmp.ne.s32.totalorder %s89, %s103
    %p105 = scmp.eq.s32.totalorder %s18, 0
    %p106 = por %p104, %p105
    %s108 = sadd.s32 %s107, 1
    %p111 = scmp.eq.s32.totalorder %s12, 3
    %p112 = scmp.ne.s32.totalorder %s107, %s109
    %p113 = scmp.eq.s32.totalorder %s12, 0
    %p114 = por %p112, %p113
    %p115 = scmp.ne.s32.totalorder %s107, %s109
    %p116 = scmp.eq.s32.totalorder %s17, 3
    %p117 = por %p115, %p116
    %p118 = scmp.ne.s32.totalorder %s109, %s110
    %p119 = scmp.eq.s32.totalorder %s17, 0
    %p120 = por %p118, %p119
    %p121 = scmp.ne.s32.totalorder %s109, %s110
    %p122 = scmp.eq.s32.totalorder %s18, 3
    %p123 = por %p121, %p122
    %p125 = scmp.ne.s32.totalorder %s110, %s124
    %p126 = scmp.eq.s32.totalorder %s18, 0
    %p127 = por %p125, %p126
    %s129 = sadd.s32 %s128, 1
    %p132 = scmp.eq.s32.totalorder %s12, 3
    %p133 = scmp.ne.s32.totalorder %s128, %s130
    %p134 = scmp.eq.s32.totalorder %s12, 0
    %p135 = por %p133, %p134
    %p136 = scmp.ne.s32.totalorder %s128, %s130
    %p137 = scmp.eq.s32.totalorder %s17, 3
    %p138 = por %p136, %p137
    %p139 = scmp.ne.s32.totalorder %s130, %s131
    %p140 = scmp.eq.s32.totalorder %s17, 0
    %p141 = por %p139, %p140
    %p142 = scmp.ne.s32.totalorder %s130, %s131
    %p143 = scmp.eq.s32.totalorder %s18, 3
    %p144 = por %p142, %p143
    %p146 = scmp.ne.s32.totalorder %s131, %s145
    %p147 = scmp.eq.s32.totalorder %s18, 0
    %p148 = por %p146, %p147
    %s150 = sadd.s32 %s149, 1
    %p153 = scmp.eq.s32.totalorder %s12, 3
    %p154 = scmp.ne.s32.totalorder %s149, %s151
    %p155 = scmp.eq.s32.totalorder %s12, 0
    %p156 = por %p154, %p155
    %p157 = scmp.ne.s32.totalorder %s149, %s151
    %p158 = scmp.eq.s32.totalorder %s17, 3
    %p159 = por %p157, %p158
    %p160 = scmp.ne.s32.totalorder %s151, %s152
    %p161 = scmp.eq.s32.totalorder %s17, 0
    %p162 = por %p160, %p161
    %p163 = scmp.ne.s32.totalorder %s151, %s152
    %p164 = scmp.eq.s32.totalorder %s18, 3
    %p165 = por %p163, %p164
    %p167 = scmp.ne.s32.totalorder %s152, %s166
    %p168 = scmp.eq.s32.totalorder %s18, 0
    %p169 = por %p167, %p168
    %s170 = ssub.s32 %s19, %s31
    %s171 = ssub.s32 %s20, %s27
    %s172 = sor.u32 %s170, %s171
    %p173 = scmp.eq.s32.totalorder %s172, 0
    %s175 = sadd.s32 %s174, 1
    %s176 = scalar_select %p173, %s174, %s175
    %p179 = pneg %p173
    %p180 = scmp.eq.s32.totalorder %s12, 3
    %p181 = por %p179, %p180
    %p182 = scmp.ne.s32.totalorder %s174, %s177
    %p183 = scmp.eq.s32.totalorder %s12, 0
    %p184 = por %p182, %p183
    %p185 = scmp.ne.s32.totalorder %s174, %s177
    %p186 = scmp.eq.s32.totalorder %s17, 3
    %p187 = por %p185, %p186
    %p188 = scmp.ne.s32.totalorder %s177, %s178
    %p189 = scmp.eq.s32.totalorder %s17, 0
    %p190 = por %p188, %p189
    %p191 = scmp.ne.s32.totalorder %s177, %s178
    %p192 = scmp.eq.s32.totalorder %s18, 3
    %p193 = por %p191, %p192
    %p195 = scmp.ne.s32.totalorder %s178, %s194
    %p196 = scmp.eq.s32.totalorder %s18, 0
    %p197 = por %p195, %p196
    %p198 = scmp.le.s32.totalorder 1, %s12
    %p199 = scmp.lt.s32.totalorder %s12, 5
    %p200 = pnand %p198, %p199
    %p201 = pneg %p200
    // Predicated region
    $region9: #{double_attention_layer.3} parent=5 // pred_check
      _
    $region10: #{double_attention_layer.3} parent=5 // pred_check_branch
      %203 = sbr.rel (%p200) target = $region12
    $region11: #{double_attention_layer.3} parent=5 // pred_region
      %s204 = ssub.s32 %s12, 1
      // Predicated region
      $region13: #{double_attention_layer.3} parent=11 // pred_check
        %p205 = pneg %p99
      $region14: #{double_attention_layer.3} parent=11 // pred_check_branch
        %207 = sbr.rel (%p205) target = $region16
      $region15: #{double_attention_layer.3} parent=11 // pred_region
        _
      $region16: #{double_attention_layer.3} parent=11 // pred_fallthru
        _
      // Predicated region
      $region17: #{double_attention_layer.3} parent=11 // pred_check
        %p208 = pneg %p120
      $region18: #{double_attention_layer.3} parent=11 // pred_check_branch
        %210 = sbr.rel (%p208) target = $region20
      $region19: #{double_attention_layer.3} parent=11 // pred_region
        _
      $region20: #{double_attention_layer.3} parent=11 // pred_fallthru
        _
      // Predicated region
      $region21: #{double_attention_layer.3} parent=11 // pred_check
        %p211 = pneg %p141
      $region22: #{double_attention_layer.3} parent=11 // pred_check_branch
        %213 = sbr.rel (%p211) target = $region24
      $region23: #{double_attention_layer.3} parent=11 // pred_region
        _
      $region24: #{double_attention_layer.3} parent=11 // pred_fallthru
        _
      // Predicated region
      $region25: #{double_attention_layer.3} parent=11 // pred_check
        %p214 = pneg %p162
      $region26: #{double_attention_layer.3} parent=11 // pred_check_branch
        %216 = sbr.rel (%p214) target = $region28
      $region27: #{double_attention_layer.3} parent=11 // pred_region
        _
      $region28: #{double_attention_layer.3} parent=11 // pred_fallthru
        _
    $region12: #{double_attention_layer.3} parent=5 // pred_fallthru
      _
    %p217 = scmp.lt.s32.totalorder %s12, 4
    // Predicated region
    $region29: #{double_attention_layer.3} parent=5 // pred_check
      %p218 = pneg %p217
    $region30: #{double_attention_layer.3} parent=5 // pred_check_branch
      %220 = sbr.rel (%p218) target = $region32
    $region31: #{double_attention_layer.3} parent=5 // pred_region
      // Predicated region
      $region33: #{double_attention_layer.3} parent=31 // pred_check
        %p221 = pneg %p46
      $region34: #{double_attention_layer.3} parent=31 // pred_check_branch
        %223 = sbr.rel (%p221) target = $region36
      $region35: #{double_attention_layer.3} parent=31 // pred_region
        %s224 = smul.u32 16, %s20
        %p225 = scmp.lt.s32.totalorder %s19, 1
        %s226 = scalar_select %p225, %s19, 1
        %p227 = scmp.lt.s32.totalorder %s224, 31
        %s228 = scalar_select %p227, %s224, 31
        %s229 = smul.addr %s226, 32
        %s230 = sadd.s32 %s228, %s229
        %s231 = smul.addr %s230, 8
        %s232 = scalar_lea.vmem %s0, %s231
        %s233 = smul.u32 16, %s20
      $region36: #{double_attention_layer.3} parent=31 // pred_fallthru
        _
      // Predicated region
      $region37: #{double_attention_layer.3} parent=31 // pred_check
        %p234 = pneg %p72
      $region38: #{double_attention_layer.3} parent=31 // pred_check_branch
        %236 = sbr.rel (%p234) target = $region40
      $region39: #{double_attention_layer.3} parent=31 // pred_region
        %p237 = scmp.lt.s32.totalorder %s19, 1
        %s238 = scalar_select %p237, %s19, 1
        %s239 = smul.addr %s238, 16
        %s240 = smul.addr %s239, 4
        %s241 = scalar_lea.vmem %s1, %s240
      $region40: #{double_attention_layer.3} parent=31 // pred_fallthru
        _
    $region32: #{double_attention_layer.3} parent=5 // pred_fallthru
      _
    %p242 = scmp.le.s32.totalorder 1, %s12
    %p243 = scmp.lt.s32.totalorder %s12, 5
    %p244 = pnand %p242, %p243
    %p245 = pneg %p244
    // Predicated region
    $region41: #{double_attention_layer.3} parent=5 // pred_check
      _
    $region42: #{double_attention_layer.3} parent=5 // pred_check_branch
      %247 = sbr.rel (%p244) target = $region44
    $region43: #{double_attention_layer.3} parent=5 // pred_region
      %s248 = ssub.s32 %s12, 1
      %s249 = smul.u32 16, %s22
      %p250 = scmp.lt.s32.totalorder %s21, 1
      %s251 = scalar_select %p250, %s21, 1
      %p252 = scmp.lt.s32.totalorder %s249, 31
      %s253 = scalar_select %p252, %s249, 31
      %s254 = smul.addr %s251, 32
      %s255 = sadd.s32 %s253, %s254
      %s256 = smul.addr %s255, 8
      %s257 = scalar_lea.vmem %s0, %s256
      %p258 = pneg %p52
      %p259 = pneg %p49
      %p260 = scmp.lt.s32.totalorder %s21, 1
      %s261 = scalar_select %p260, %s21, 1
      %s262 = smul.addr %s261, 16
      %s263 = smul.addr %s262, 4
      %s264 = scalar_lea.vmem %s1, %s263
      %p265 = pneg %p78
      %p266 = pneg %p75
      %p267 = pneg %p99
      %p268 = pneg %p96
      %p269 = pneg %p120
      %p270 = pneg %p117
      %p271 = pneg %p141
      %p272 = pneg %p138
      %p273 = pneg %p162
      %p274 = pneg %p159
      %p275 = pneg %p190
      %p276 = pneg %p187
      %s277 = smul.u32 16, %s22
      %p278 = scmp.lt.s32.totalorder %s21, 1
      %s279 = scalar_select %p278, %s21, 1
      %p280 = scmp.lt.s32.totalorder %s277, 31
      %s281 = scalar_select %p280, %s277, 31
      %s282 = smul.addr %s279, 32
      %s283 = sadd.s32 %s281, %s282
      %s284 = smul.addr %s283, 8
      %s285 = scalar_lea.vmem %s6, %s284
      %s286 = smul.u32 16, %s22
      %p287 = scmp.lt.s32.totalorder %s21, 1
      %s288 = scalar_select %p287, %s21, 1
      %p289 = scmp.lt.s32.totalorder %s286, 31
      %s290 = scalar_select %p289, %s286, 31
      %s291 = smul.addr %s288, 32
      %s292 = sadd.s32 %s290, %s291
      %s293 = smul.addr %s292, 8
      %s294 = scalar_lea.vmem %s0, %s293
      %s295 = smul.u32 16, %s22
      %p296 = scmp.lt.s32.totalorder %s21, 1
      %s297 = scalar_select %p296, %s21, 1
      %s298 = smul.addr %s297, 16
      %s299 = smul.addr %s298, 4
      %s300 = scalar_lea.vmem %s1, %s299
      %s301 = smul.u32 16, %s22
      %p302 = scmp.lt.s32.totalorder %s21, 1
      %s303 = scalar_select %p302, %s21, 1
      %p304 = scmp.lt.s32.totalorder %s301, 31
      %s305 = scalar_select %p304, %s301, 31
      %s306 = smul.addr %s303, 32
      %s307 = sadd.s32 %s305, %s306
      %s308 = smul.addr %s307, 8
      %s309 = scalar_lea.vmem %s6, %s308
      %s310 = smul.u32 16, %s22
      %v311 = vld [vmem:[%s294] sm:$0xff]
      %v312 = vld [vmem:[%s294 + $0x8] sm:$0xff]
      %v313 = vld [vmem:[%s294 + $0x10] sm:$0xff]
      %v314 = vld [vmem:[%s294 + $0x18] sm:$0xff]
      %v315 = vld [vmem:[%s294 + $0x20] sm:$0xff]
      %v316 = vld [vmem:[%s294 + $0x28] sm:$0xff]
      %v317 = vld [vmem:[%s294 + $0x30] sm:$0xff]
      %v318 = vld [vmem:[%s294 + $0x38] sm:$0xff]
      %v319 = vld [vmem:[%s294 + $0x40] sm:$0xff]
      %v320 = vld [vmem:[%s294 + $0x48] sm:$0xff]
      %v321 = vld [vmem:[%s294 + $0x50] sm:$0xff]
      %v322 = vld [vmem:[%s294 + $0x58] sm:$0xff]
      %v323 = vld [vmem:[%s294 + $0x60] sm:$0xff]
      %v324 = vld [vmem:[%s294 + $0x68] sm:$0xff]
      %v325 = vld [vmem:[%s294 + $0x70] sm:$0xff]
      %v326 = vld [vmem:[%s294 + $0x78] sm:$0xff]
      %v327 = vpack.c.bf16 %v312, %v311
      %v328 = vpack.c.bf16 %v314, %v313
      %v329 = vpack.c.bf16 %v316, %v315
      %v330 = vpack.c.bf16 %v318, %v317
      %v331 = vpack.c.bf16 %v320, %v319
      %v332 = vpack.c.bf16 %v322, %v321
      %v333 = vpack.c.bf16 %v324, %v323
      %v334 = vpack.c.bf16 %v326, %v325
      %v335 = vld [vmem:[%s2] sm:$0xf]
      %v336 = vld [vmem:[%s2 + $0x4] sm:$0xf]
      %v337 = vld [vmem:[%s2 + $0x8] sm:$0xf]
      %v338 = vld [vmem:[%s2 + $0xc] sm:$0xf]
      %v339 = vld [vmem:[%s2 + $0x10] sm:$0xf]
      %v340 = vld [vmem:[%s2 + $0x14] sm:$0xf]
      %v341 = vld [vmem:[%s2 + $0x18] sm:$0xf]
      %v342 = vld [vmem:[%s2 + $0x1c] sm:$0xf]
      %v343 = vld [vmem:[%s2 + $0x20] sm:$0xf]
      %v344 = vld [vmem:[%s2 + $0x24] sm:$0xf]
      %v345 = vld [vmem:[%s2 + $0x28] sm:$0xf]
      %v346 = vld [vmem:[%s2 + $0x2c] sm:$0xf]
      %v347 = vld [vmem:[%s2 + $0x30] sm:$0xf]
      %v348 = vld [vmem:[%s2 + $0x34] sm:$0xf]
      %v349 = vld [vmem:[%s2 + $0x38] sm:$0xf]
      %v350 = vld [vmem:[%s2 + $0x3c] sm:$0xf]
      %v351 = vld [vmem:[%s3] sm:$0x1]
      %v353 = vperm.slane %v351, 0
      %v371 = vunpack.c.l.b16 %v335
      %v372 = vunpack.c.l.b16 %v336
      %v373 = vunpack.c.l.b16 %v337
      %v374 = vunpack.c.l.b16 %v338
      %v375 = vunpack.c.l.b16 %v339
      %v376 = vunpack.c.l.b16 %v340
      %v377 = vunpack.c.l.b16 %v341
      %v378 = vunpack.c.l.b16 %v342
      %v379 = vunpack.c.l.b16 %v343
      %v380 = vunpack.c.l.b16 %v344
      %v381 = vunpack.c.l.b16 %v345
      %v382 = vunpack.c.l.b16 %v346
      %v383 = vunpack.c.l.b16 %v347
      %v384 = vunpack.c.l.b16 %v348
      %v385 = vunpack.c.l.b16 %v349
      %v386 = vunpack.c.l.b16 %v350
      %v387 = vpack.c.b16 %v372, %v371
      %v388 = vpack.c.b16 %v374, %v373
      %v389 = vpack.c.b16 %v376, %v375
      %v390 = vpack.c.b16 %v378, %v377
      %v391 = vpack.c.b16 %v380, %v379
      %v392 = vpack.c.b16 %v382, %v381
      %v393 = vpack.c.b16 %v384, %v383
      %v394 = vpack.c.b16 %v386, %v385
      %403 = vmatpush.bf16.msra.mxu0 %v394
      %404 = vmatpush.bf16.msra.mxu0 %v393
      %405 = vmatpush.bf16.msra.mxu0 %v392
      %406 = vmatpush.bf16.msra.mxu0 %v391
      %407 = vmatpush.bf16.msra.mxu0 %v390
      %408 = vmatpush.bf16.msra.mxu0 %v389
      %409 = vmatpush.bf16.msra.mxu0 %v388
      %410 = vmatpush.bf16.msra.mxu0 %v387
      %411 = vmatmul.bf16.gmra.mxu0 %v327
      %v412 = vpop.f32.mrf.mxu0
      %v413 = vadd.f32 %v353, %v412
      %v414 = vpop.f32.mrf.mxu0
      %v415 = vadd.f32 %v353, %v414
      %416 = vmatmul.bf16.gmra.mxu0 %v328
      %v417 = vpop.f32.mrf.mxu0
      %v418 = vadd.f32 %v353, %v417
      %v419 = vpop.f32.mrf.mxu0
      %v420 = vadd.f32 %v353, %v419
      %421 = vmatmul.bf16.gmra.mxu0 %v329
      %v422 = vpop.f32.mrf.mxu0
      %v423 = vadd.f32 %v353, %v422
      %v424 = vpop.f32.mrf.mxu0
      %v425 = vadd.f32 %v353, %v424
      %426 = vmatmul.bf16.gmra.mxu0 %v330
      %v427 = vpop.f32.mrf.mxu0
      %v428 = vadd.f32 %v353, %v427
      %v429 = vpop.f32.mrf.mxu0
      %v430 = vadd.f32 %v353, %v429
      %431 = vmatmul.bf16.gmra.mxu0 %v331
      %v432 = vpop.f32.mrf.mxu0
      %v433 = vadd.f32 %v353, %v432
      %v434 = vpop.f32.mrf.mxu0
      %v435 = vadd.f32 %v353, %v434
      %436 = vmatmul.bf16.gmra.mxu0 %v332
      %v437 = vpop.f32.mrf.mxu0
      %v438 = vadd.f32 %v353, %v437
      %v439 = vpop.f32.mrf.mxu0
      %v440 = vadd.f32 %v353, %v439
      %441 = vmatmul.bf16.gmra.mxu0 %v333
      %v442 = vpop.f32.mrf.mxu0
      %v443 = vadd.f32 %v353, %v442
      %v444 = vpop.f32.mrf.mxu0
      %v445 = vadd.f32 %v353, %v444
      %446 = vmatmul.bf16.gmra.mxu0 %v334
      %v447 = vpop.f32.mrf.mxu0
      %v448 = vadd.f32 %v353, %v447
      %v449 = vpop.f32.mrf.mxu0
      %v450 = vadd.f32 %v353, %v449
      %451 = vdwg.mxu0
      %452 = vmax.xlane.f32.xlu0 %v413
      %v453 = vpop.xlane.xlu0 %452
      %454 = vmax.xlane.f32.xlu0 %v415
      %v455 = vpop.xlane.xlu0 %454
      %456 = vmax.xlane.f32.xlu0 %v418
      %v457 = vpop.xlane.xlu0 %456
      %458 = vmax.xlane.f32.xlu0 %v420
      %v459 = vpop.xlane.xlu0 %458
      %460 = vmax.xlane.f32.xlu0 %v423
      %v461 = vpop.xlane.xlu0 %460
      %462 = vmax.xlane.f32.xlu0 %v425
      %v463 = vpop.xlane.xlu0 %462
      %464 = vmax.xlane.f32.xlu0 %v428
      %v465 = vpop.xlane.xlu0 %464
      %466 = vmax.xlane.f32.xlu0 %v430
      %v467 = vpop.xlane.xlu0 %466
      %468 = vmax.xlane.f32.xlu0 %v433
      %v469 = vpop.xlane.xlu0 %468
      %470 = vmax.xlane.f32.xlu0 %v435
      %v471 = vpop.xlane.xlu0 %470
      %472 = vmax.xlane.f32.xlu0 %v438
      %v473 = vpop.xlane.xlu0 %472
      %474 = vmax.xlane.f32.xlu0 %v440
      %v475 = vpop.xlane.xlu0 %474
      %476 = vmax.xlane.f32.xlu0 %v443
      %v477 = vpop.xlane.xlu0 %476
      %478 = vmax.xlane.f32.xlu0 %v445
      %v479 = vpop.xlane.xlu0 %478
      %480 = vmax.xlane.f32.xlu0 %v448
      %v481 = vpop.xlane.xlu0 %480
      %482 = vmax.xlane.f32.xlu0 %v450
      %v483 = vpop.xlane.xlu0 %482
      %v484 = vsub.f32 %v413, %v453
      %v485 = vsub.f32 %v415, %v455
      %v486 = vsub.f32 %v418, %v457
      %v487 = vsub.f32 %v420, %v459
      %v488 = vsub.f32 %v423, %v461
      %v489 = vsub.f32 %v425, %v463
      %v490 = vsub.f32 %v428, %v465
      %v491 = vsub.f32 %v430, %v467
      %v492 = vsub.f32 %v433, %v469
      %v493 = vsub.f32 %v435, %v471
      %v494 = vsub.f32 %v438, %v473
      %v495 = vsub.f32 %v440, %v475
      %v496 = vsub.f32 %v443, %v477
      %v497 = vsub.f32 %v445, %v479
      %v498 = vsub.f32 %v448, %v481
      %v499 = vsub.f32 %v450, %v483
      %v500 = vmul.f32 %v484, 1.442695
      %v501 = vpow.pop %v500
      %v502 = vmul.f32 %v485, 1.442695
      %v503 = vpow.pop %v502
      %v504 = vmul.f32 %v486, 1.442695
      %v505 = vpow.pop %v504
      %v506 = vmul.f32 %v487, 1.442695
      %v507 = vpow.pop %v506
      %v508 = vmul.f32 %v488, 1.442695
      %v509 = vpow.pop %v508
      %v510 = vmul.f32 %v489, 1.442695
      %v511 = vpow.pop %v510
      %v512 = vmul.f32 %v490, 1.442695
      %v513 = vpow.pop %v512
      %v514 = vmul.f32 %v491, 1.442695
      %v515 = vpow.pop %v514
      %v516 = vmul.f32 %v492, 1.442695
      %v517 = vpow.pop %v516
      %v518 = vmul.f32 %v493, 1.442695
      %v519 = vpow.pop %v518
      %v520 = vmul.f32 %v494, 1.442695
      %v521 = vpow.pop %v520
      %v522 = vmul.f32 %v495, 1.442695
      %v523 = vpow.pop %v522
      %v524 = vmul.f32 %v496, 1.442695
      %v525 = vpow.pop %v524
      %v526 = vmul.f32 %v497, 1.442695
      %v527 = vpow.pop %v526
      %v528 = vmul.f32 %v498, 1.442695
      %v529 = vpow.pop %v528
      %v530 = vmul.f32 %v499, 1.442695
      %v531 = vpow.pop %v530
      %532 = vadd.xlane.f32.xlu0 %v501
      %v533 = vpop.xlane.xlu0 %532
      %534 = vadd.xlane.f32.xlu0 %v503
      %v535 = vpop.xlane.xlu0 %534
      %536 = vadd.xlane.f32.xlu0 %v505
      %v537 = vpop.xlane.xlu0 %536
      %538 = vadd.xlane.f32.xlu0 %v507
      %v539 = vpop.xlane.xlu0 %538
      %540 = vadd.xlane.f32.xlu0 %v509
      %v541 = vpop.xlane.xlu0 %540
      %542 = vadd.xlane.f32.xlu0 %v511
      %v543 = vpop.xlane.xlu0 %542
      %544 = vadd.xlane.f32.xlu0 %v513
      %v545 = vpop.xlane.xlu0 %544
      %546 = vadd.xlane.f32.xlu0 %v515
      %v547 = vpop.xlane.xlu0 %546
      %548 = vadd.xlane.f32.xlu0 %v517
      %v549 = vpop.xlane.xlu0 %548
      %550 = vadd.xlane.f32.xlu0 %v519
      %v551 = vpop.xlane.xlu0 %550
      %552 = vadd.xlane.f32.xlu0 %v521
      %v553 = vpop.xlane.xlu0 %552
      %554 = vadd.xlane.f32.xlu0 %v523
      %v555 = vpop.xlane.xlu0 %554
      %556 = vadd.xlane.f32.xlu0 %v525
      %v557 = vpop.xlane.xlu0 %556
      %558 = vadd.xlane.f32.xlu0 %v527
      %v559 = vpop.xlane.xlu0 %558
      %560 = vadd.xlane.f32.xlu0 %v529
      %v561 = vpop.xlane.xlu0 %560
      %562 = vadd.xlane.f32.xlu0 %v531
      %v563 = vpop.xlane.xlu0 %562
      %v564 = vrcp.pop %v533
      %v565 = vrcp.pop %v535
      %v566 = vrcp.pop %v537
      %v567 = vrcp.pop %v539
      %v568 = vrcp.pop %v541
      %v569 = vrcp.pop %v543
      %v570 = vrcp.pop %v545
      %v571 = vrcp.pop %v547
      %v572 = vrcp.pop %v549
      %v573 = vrcp.pop %v551
      %v574 = vrcp.pop %v553
      %v575 = vrcp.pop %v555
      %v576 = vrcp.pop %v557
      %v577 = vrcp.pop %v559
      %v578 = vrcp.pop %v561
      %v579 = vrcp.pop %v563
      %v580 = vmul.f32 %v501, %v564
      %v581 = vmul.f32 %v503, %v565
      %v582 = vmul.f32 %v505, %v566
      %v583 = vmul.f32 %v507, %v567
      %v584 = vmul.f32 %v509, %v568
      %v585 = vmul.f32 %v511, %v569
      %v586 = vmul.f32 %v513, %v570
      %v587 = vmul.f32 %v515, %v571
      %v588 = vmul.f32 %v517, %v572
      %v589 = vmul.f32 %v519, %v573
      %v590 = vmul.f32 %v521, %v574
      %v591 = vmul.f32 %v523, %v575
      %v592 = vmul.f32 %v525, %v576
      %v593 = vmul.f32 %v527, %v577
      %v594 = vmul.f32 %v529, %v578
      %v595 = vmul.f32 %v531, %v579
      %v596 = vpack.c.bf16 %v581, %v580
      %v597 = vpack.c.bf16 %v583, %v582
      %v598 = vpack.c.bf16 %v585, %v584
      %v599 = vpack.c.bf16 %v587, %v586
      %v600 = vpack.c.bf16 %v589, %v588
      %v601 = vpack.c.bf16 %v591, %v590
      %v602 = vpack.c.bf16 %v593, %v592
      %v603 = vpack.c.bf16 %v595, %v594
      %v604 = vld [vmem:[%s300] sm:$0xf]
      %v605 = vld [vmem:[%s300 + $0x4] sm:$0xf]
      %v606 = vld [vmem:[%s300 + $0x8] sm:$0xf]
      %v607 = vld [vmem:[%s300 + $0xc] sm:$0xf]
      %v608 = vld [vmem:[%s300 + $0x10] sm:$0xf]
      %v609 = vld [vmem:[%s300 + $0x14] sm:$0xf]
      %v610 = vld [vmem:[%s300 + $0x18] sm:$0xf]
      %v611 = vld [vmem:[%s300 + $0x1c] sm:$0xf]
      %v612 = vld [vmem:[%s300 + $0x20] sm:$0xf]
      %v613 = vld [vmem:[%s300 + $0x24] sm:$0xf]
      %v614 = vld [vmem:[%s300 + $0x28] sm:$0xf]
      %v615 = vld [vmem:[%s300 + $0x2c] sm:$0xf]
      %v616 = vld [vmem:[%s300 + $0x30] sm:$0xf]
      %v617 = vld [vmem:[%s300 + $0x34] sm:$0xf]
      %v618 = vld [vmem:[%s300 + $0x38] sm:$0xf]
      %v619 = vld [vmem:[%s300 + $0x3c] sm:$0xf]
      %v636 = vunpack.c.l.b16 %v604
      %v637 = vunpack.c.l.b16 %v605
      %v638 = vunpack.c.l.b16 %v606
      %v639 = vunpack.c.l.b16 %v607
      %v640 = vunpack.c.l.b16 %v608
      %v641 = vunpack.c.l.b16 %v609
      %v642 = vunpack.c.l.b16 %v610
      %v643 = vunpack.c.l.b16 %v611
      %v644 = vunpack.c.l.b16 %v612
      %v645 = vunpack.c.l.b16 %v613
      %v646 = vunpack.c.l.b16 %v614
      %v647 = vunpack.c.l.b16 %v615
      %v648 = vunpack.c.l.b16 %v616
      %v649 = vunpack.c.l.b16 %v617
      %v650 = vunpack.c.l.b16 %v618
      %v651 = vunpack.c.l.b16 %v619
      %v652 = vpack.c.b16 %v637, %v636
      %v653 = vpack.c.b16 %v639, %v638
      %v654 = vpack.c.b16 %v641, %v640
      %v655 = vpack.c.b16 %v643, %v642
      %v656 = vpack.c.b16 %v645, %v644
      %v657 = vpack.c.b16 %v647, %v646
      %v658 = vpack.c.b16 %v649, %v648
      %v659 = vpack.c.b16 %v651, %v650
      %668 = vmatpush.bf16.msra.mxu0 %v659
      %669 = vmatpush.bf16.msra.mxu0 %v658
      %670 = vmatpush.bf16.msra.mxu0 %v657
      %671 = vmatpush.bf16.msra.mxu0 %v656
      %672 = vmatpush.bf16.msra.mxu0 %v655
      %673 = vmatpush.bf16.msra.mxu0 %v654
      %674 = vmatpush.bf16.msra.mxu0 %v653
      %675 = vmatpush.bf16.msra.mxu0 %v652
      %676 = vmatmul.bf16.gmra.mxu0 %v596
      %v677 = vpop.f32.mrf.mxu0
      %v678 = vadd.f32 0.0, %v677
      %v679 = vpop.f32.mrf.mxu0
      %v680 = vadd.f32 0.0, %v679
      %681 = vmatmul.bf16.gmra.mxu0 %v597
      %v682 = vpop.f32.mrf.mxu0
      %v683 = vadd.f32 0.0, %v682
      %v684 = vpop.f32.mrf.mxu0
      %v685 = vadd.f32 0.0, %v684
      %686 = vmatmul.bf16.gmra.mxu0 %v598
      %v687 = vpop.f32.mrf.mxu0
      %v688 = vadd.f32 0.0, %v687
      %v689 = vpop.f32.mrf.mxu0
      %v690 = vadd.f32 0.0, %v689
      %691 = vmatmul.bf16.gmra.mxu0 %v599
      %v692 = vpop.f32.mrf.mxu0
      %v693 = vadd.f32 0.0, %v692
      %v694 = vpop.f32.mrf.mxu0
      %v695 = vadd.f32 0.0, %v694
      %696 = vmatmul.bf16.gmra.mxu0 %v600
      %v697 = vpop.f32.mrf.mxu0
      %v698 = vadd.f32 0.0, %v697
      %v699 = vpop.f32.mrf.mxu0
      %v700 = vadd.f32 0.0, %v699
      %701 = vmatmul.bf16.gmra.mxu0 %v601
      %v702 = vpop.f32.mrf.mxu0
      %v703 = vadd.f32 0.0, %v702
      %v704 = vpop.f32.mrf.mxu0
      %v705 = vadd.f32 0.0, %v704
      %706 = vmatmul.bf16.gmra.mxu0 %v602
      %v707 = vpop.f32.mrf.mxu0
      %v708 = vadd.f32 0.0, %v707
      %v709 = vpop.f32.mrf.mxu0
      %v710 = vadd.f32 0.0, %v709
      %711 = vmatmul.bf16.gmra.mxu0 %v603
      %v712 = vpop.f32.mrf.mxu0
      %v713 = vadd.f32 0.0, %v712
      %v714 = vpop.f32.mrf.mxu0
      %v715 = vadd.f32 0.0, %v714
      %716 = vdwg.mxu0
      %v717 = vpack.c.bf16 %v680, %v678
      %v718 = vpack.c.bf16 %v685, %v683
      %v719 = vpack.c.bf16 %v690, %v688
      %v720 = vpack.c.bf16 %v695, %v693
      %v721 = vpack.c.bf16 %v700, %v698
      %v722 = vpack.c.bf16 %v705, %v703
      %v723 = vpack.c.bf16 %v710, %v708
      %v724 = vpack.c.bf16 %v715, %v713
      %v725 = vld [vmem:[%s4] sm:$0xf]
      %v726 = vld [vmem:[%s4 + $0x4] sm:$0xf]
      %v727 = vld [vmem:[%s4 + $0x8] sm:$0xf]
      %v728 = vld [vmem:[%s4 + $0xc] sm:$0xf]
      %v729 = vld [vmem:[%s4 + $0x10] sm:$0xf]
      %v730 = vld [vmem:[%s4 + $0x14] sm:$0xf]
      %v731 = vld [vmem:[%s4 + $0x18] sm:$0xf]
      %v732 = vld [vmem:[%s4 + $0x1c] sm:$0xf]
      %v733 = vld [vmem:[%s4 + $0x20] sm:$0xf]
      %v734 = vld [vmem:[%s4 + $0x24] sm:$0xf]
      %v735 = vld [vmem:[%s4 + $0x28] sm:$0xf]
      %v736 = vld [vmem:[%s4 + $0x2c] sm:$0xf]
      %v737 = vld [vmem:[%s4 + $0x30] sm:$0xf]
      %v738 = vld [vmem:[%s4 + $0x34] sm:$0xf]
      %v739 = vld [vmem:[%s4 + $0x38] sm:$0xf]
      %v740 = vld [vmem:[%s4 + $0x3c] sm:$0xf]
      %v741 = vld [vmem:[%s5] sm:$0x1]
      %v743 = vperm.slane %v741, 0
      %v761 = vunpack.c.l.b16 %v725
      %v762 = vunpack.c.l.b16 %v726
      %v763 = vunpack.c.l.b16 %v727
      %v764 = vunpack.c.l.b16 %v728
      %v765 = vunpack.c.l.b16 %v729
      %v766 = vunpack.c.l.b16 %v730
      %v767 = vunpack.c.l.b16 %v731
      %v768 = vunpack.c.l.b16 %v732
      %v769 = vunpack.c.l.b16 %v733
      %v770 = vunpack.c.l.b16 %v734
      %v771 = vunpack.c.l.b16 %v735
      %v772 = vunpack.c.l.b16 %v736
      %v773 = vunpack.c.l.b16 %v737
      %v774 = vunpack.c.l.b16 %v738
      %v775 = vunpack.c.l.b16 %v739
      %v776 = vunpack.c.l.b16 %v740
      %v777 = vpack.c.b16 %v762, %v761
      %v778 = vpack.c.b16 %v764, %v763
      %v779 = vpack.c.b16 %v766, %v765
      %v780 = vpack.c.b16 %v768, %v767
      %v781 = vpack.c.b16 %v770, %v769
      %v782 = vpack.c.b16 %v772, %v771
      %v783 = vpack.c.b16 %v774, %v773
      %v784 = vpack.c.b16 %v776, %v775
      %793 = vmatpush.bf16.msra.mxu0 %v784
      %794 = vmatpush.bf16.msra.mxu0 %v783
      %795 = vmatpush.bf16.msra.mxu0 %v782
      %796 = vmatpush.bf16.msra.mxu0 %v781
      %797 = vmatpush.bf16.msra.mxu0 %v780
      %798 = vmatpush.bf16.msra.mxu0 %v779
      %799 = vmatpush.bf16.msra.mxu0 %v778
      %800 = vmatpush.bf16.msra.mxu0 %v777
      %801 = vmatmul.bf16.gmra.mxu0 %v717
      %v802 = vpop.f32.mrf.mxu0
      %v803 = vadd.f32 %v743, %v802
      %v804 = vpop.f32.mrf.mxu0
      %v805 = vadd.f32 %v743, %v804
      %806 = vmatmul.bf16.gmra.mxu0 %v718
      %v807 = vpop.f32.mrf.mxu0
      %v808 = vadd.f32 %v743, %v807
      %v809 = vpop.f32.mrf.mxu0
      %v810 = vadd.f32 %v743, %v809
      %811 = vmatmul.bf16.gmra.mxu0 %v719
      %v812 = vpop.f32.mrf.mxu0
      %v813 = vadd.f32 %v743, %v812
      %v814 = vpop.f32.mrf.mxu0
      %v815 = vadd.f32 %v743, %v814
      %816 = vmatmul.bf16.gmra.mxu0 %v720
      %v817 = vpop.f32.mrf.mxu0
      %v818 = vadd.f32 %v743, %v817
      %v819 = vpop.f32.mrf.mxu0
      %v820 = vadd.f32 %v743, %v819
      %821 = vmatmul.bf16.gmra.mxu0 %v721
      %v822 = vpop.f32.mrf.mxu0
      %v823 = vadd.f32 %v743, %v822
      %v824 = vpop.f32.mrf.mxu0
      %v825 = vadd.f32 %v743, %v824
      %826 = vmatmul.bf16.gmra.mxu0 %v722
      %v827 = vpop.f32.mrf.mxu0
      %v828 = vadd.f32 %v743, %v827
      %v829 = vpop.f32.mrf.mxu0
      %v830 = vadd.f32 %v743, %v829
      %831 = vmatmul.bf16.gmra.mxu0 %v723
      %v832 = vpop.f32.mrf.mxu0
      %v833 = vadd.f32 %v743, %v832
      %v834 = vpop.f32.mrf.mxu0
      %v835 = vadd.f32 %v743, %v834
      %836 = vmatmul.bf16.gmra.mxu0 %v724
      %v837 = vpop.f32.mrf.mxu0
      %v838 = vadd.f32 %v743, %v837
      %v839 = vpop.f32.mrf.mxu0
      %v840 = vadd.f32 %v743, %v839
      %841 = vdwg.mxu0
      %v842 = vadd.f32 %v803, %v311
      %v843 = vadd.f32 %v805, %v312
      %v844 = vadd.f32 %v808, %v313
      %v845 = vadd.f32 %v810, %v314
      %v846 = vadd.f32 %v813, %v315
      %v847 = vadd.f32 %v815, %v316
      %v848 = vadd.f32 %v818, %v317
      %v849 = vadd.f32 %v820, %v318
      %v850 = vadd.f32 %v823, %v319
      %v851 = vadd.f32 %v825, %v320
      %v852 = vadd.f32 %v828, %v321
      %v853 = vadd.f32 %v830, %v322
      %v854 = vadd.f32 %v833, %v323
      %v855 = vadd.f32 %v835, %v324
      %v856 = vadd.f32 %v838, %v325
      %v857 = vadd.f32 %v840, %v326
      %858 = vst [vmem:[%s309] sm:$0xff] %v842
      %859 = vst [vmem:[%s309 + $0x8] sm:$0xff] %v843
      %860 = vst [vmem:[%s309 + $0x10] sm:$0xff] %v844
      %861 = vst [vmem:[%s309 + $0x18] sm:$0xff] %v845
      %862 = vst [vmem:[%s309 + $0x20] sm:$0xff] %v846
      %863 = vst [vmem:[%s309 + $0x28] sm:$0xff] %v847
      %864 = vst [vmem:[%s309 + $0x30] sm:$0xff] %v848
      %865 = vst [vmem:[%s309 + $0x38] sm:$0xff] %v849
      %866 = vst [vmem:[%s309 + $0x40] sm:$0xff] %v850
      %867 = vst [vmem:[%s309 + $0x48] sm:$0xff] %v851
      %868 = vst [vmem:[%s309 + $0x50] sm:$0xff] %v852
      %869 = vst [vmem:[%s309 + $0x58] sm:$0xff] %v853
      %870 = vst [vmem:[%s309 + $0x60] sm:$0xff] %v854
      %871 = vst [vmem:[%s309 + $0x68] sm:$0xff] %v855
      %872 = vst [vmem:[%s309 + $0x70] sm:$0xff] %v856
      %873 = vst [vmem:[%s309 + $0x78] sm:$0xff] %v857
      %s874 = smul.u32 16, %s22
      %p875 = scmp.lt.s32.totalorder %s21, 1
      %s876 = scalar_select %p875, %s21, 1
      %p877 = scmp.lt.s32.totalorder %s874, 31
      %s878 = scalar_select %p877, %s874, 31
      %s879 = smul.addr %s876, 32
      %s880 = sadd.s32 %s878, %s879
      %s881 = smul.addr %s880, 8
      %s882 = scalar_lea.vmem %s6, %s881
      // Predicated region
      $region45: #{double_attention_layer.3} parent=43 // pred_check
        %p883 = pneg %p187
      $region46: #{double_attention_layer.3} parent=43 // pred_check_branch
        %885 = sbr.rel (%p883) target = $region48
      $region47: #{double_attention_layer.3} parent=43 // pred_region
        %s886 = smul.u32 16, %s22
      $region48: #{double_attention_layer.3} parent=43 // pred_fallthru
        _
    $region44: #{double_attention_layer.3} parent=5 // pred_fallthru
      _
    %p887 = scmp.le.s32.totalorder 2, %s12
    // Predicated region
    $region49: #{double_attention_layer.3} parent=5 // pred_check
      %p888 = pneg %p887
    $region50: #{double_attention_layer.3} parent=5 // pred_check_branch
      %890 = sbr.rel (%p888) target = $region52
    $region51: #{double_attention_layer.3} parent=5 // pred_region
      %s891 = ssub.s32 %s12, 2
      // Predicated region
      $region53: #{double_attention_layer.3} parent=51 // pred_check
        %p892 = pneg %p193
      $region54: #{double_attention_layer.3} parent=51 // pred_check_branch
        %894 = sbr.rel (%p892) target = $region56
      $region55: #{double_attention_layer.3} parent=51 // pred_region
        %s895 = smul.u32 16, %s24
        %p896 = scmp.lt.s32.totalorder %s23, 1
        %s897 = scalar_select %p896, %s23, 1
        %p898 = scmp.lt.s32.totalorder %s895, 31
        %s899 = scalar_select %p898, %s895, 31
        %s900 = smul.addr %s897, 32
        %s901 = sadd.s32 %s899, %s900
        %s902 = smul.addr %s901, 8
        %s903 = scalar_lea.vmem %s6, %s902
      $region56: #{double_attention_layer.3} parent=51 // pred_fallthru
        _
    $region52: #{double_attention_layer.3} parent=5 // pred_fallthru
      _
  $region6: #{double_attention_layer.3} parent=0 // loop_footer
    %s16 = sadd.s32 1, %s12
  $region7: #{double_attention_layer.3} parent=0 // loop_footer_branch
    %11 = sbr.rel target = $region3
  $region8: #{double_attention_layer.3} parent=0 // loop_exit
    _

// kernel: double_attention_layer.2
$region0: #{double_attention_layer.2}
  #allocation0 [shape = 'u32[]', space=smem, size = 0x4, offset = 0x4, fixed_abs, tag = 'smem constant byte address 0x4 - core index']
  #allocation1 [shape = 'u32[72,128]{1,0:T(1,128)}', space=vmem, size = 0x9000, scoped, tag = 'internal scratch']
  #allocation2 [shape = 'f32[1,128]{1,0:T(1,128)}', space=vmem, size = 0x200, scoped, tag = 'scratch operand']
  #allocation3 [shape = 'f32[1,128]{1,0:T(1,128)}', space=vmem, size = 0x200, scoped, tag = 'scratch operand']
  #allocation4 [shape = 'f32[128,128]{1,0:T(8,128)}', space=vmem, size = 0x10000, scoped, tag = 'scratch operand']
  %s0 = inlined_call_operand.vmem [shape: f32[2,256,128], index: 0, kind: input, shape index: {}]
  %s1 = inlined_call_operand.vmem [shape: bf16[128,128], index: 1, kind: input, shape index: {}]
  %s2 = inlined_call_operand.vmem [shape: f32[1,128], index: 2, kind: input, shape index: {}]
  %s3 = inlined_call_operand.vmem [shape: bf16[128,128], index: 3, kind: input, shape index: {}]
  %s4 = inlined_call_operand.vmem [shape: f32[1,128], index: 4, kind: input, shape index: {}]
  %s5 = inlined_call_operand.vmem [shape: bf16[2,128,128], index: 5, kind: output, shape index: {}]
  %s6 = sld [smem:[#allocation0]]
  $region61: #{double_attention_layer.2} parent=0
    _
  %s8 = ssub.s32 1, %s6
  %s9 = scalar_select 0, %s8, %s6
  loop: start=0, step=1, limit=6
  $region2: #{double_attention_layer.2} parent=0 // loop_pre_header
    _
  $region3: #{double_attention_layer.2} parent=0 // loop_header
    %s11 = sphi 0, %s15
    %p12 = scmp.ge.s32.totalorder %s11, 6
    %s18 = sphi 0, %s30
    %s19 = sphi 0, %s26
    %s20 = sphi 0, %s18
    %s21 = sphi 0, %s19
    %s22 = sphi 0, %s20
    %s23 = sphi 0, %s21
    %s35 = sphi 0, %s37
    %s38 = sphi 0, %s35
    %s39 = sphi 0, %s38
    %s55 = sphi 0, %s39
    %s59 = sphi 0, %s59
    %s61 = sphi 0, %s59
    %s62 = sphi 0, %s61
    %s76 = sphi 0, %s62
    %s80 = sphi 0, %s80
    %s82 = sphi 0, %s80
    %s83 = sphi 0, %s82
    %s97 = sphi 0, %s83
    %s101 = sphi 0, %s101
    %s103 = sphi 0, %s101
    %s104 = sphi 0, %s103
    %s118 = sphi 0, %s104
    %s122 = sphi 0, %s122
    %s124 = sphi 0, %s122
    %s125 = sphi 0, %s124
    %s139 = sphi 0, %s125
    %s145 = sphi 0, %s147
    %s148 = sphi 0, %s145
    %s149 = sphi 0, %s148
    %s165 = sphi 0, %s149
  $region4: #{double_attention_layer.2} parent=0 // loop_header_branch
    %14 = sbr.rel (%p12) target = $region8
  $region5: #{double_attention_layer.2} parent=0 // loop_body
    %s16 = ssub.s32 %s11, 1
    %s17 = ssub.s32 %s11, 2
    %s24 = sadd.s32 1, %s19
    %p25 = scmp.ge.s32.totalorder %s24, 2
    %s26 = scalar_select %p25, 0, %s24
    %s27 = sadd.s32 1, %s18
    %s28 = scalar_select %p25, %s27, %s18
    %p29 = scmp.ge.s32.totalorder %s28, 2
    %s30 = scalar_select %p29, 0, %s28
    %s31 = ssub.s32 %s18, %s30
    %s32 = ssub.s32 %s19, %s26
    %s33 = sor.u32 %s31, %s32
    %p34 = scmp.eq.s32.totalorder %s33, 0
    %s36 = sadd.s32 %s35, 1
    %s37 = scalar_select %p34, %s35, %s36
    %p40 = pneg %p34
    %p41 = scmp.eq.s32.totalorder %s11, 3
    %p42 = por %p40, %p41
    %p43 = scmp.ne.s32.totalorder %s35, %s38
    %p44 = scmp.eq.s32.totalorder %s11, 0
    %p45 = por %p43, %p44
    %p46 = scmp.ne.s32.totalorder %s35, %s38
    %p47 = scmp.eq.s32.totalorder %s16, 3
    %p48 = por %p46, %p47
    %p49 = scmp.ne.s32.totalorder %s38, %s39
    %p50 = scmp.eq.s32.totalorder %s16, 0
    %p51 = por %p49, %p50
    %p52 = scmp.ne.s32.totalorder %s38, %s39
    %p53 = scmp.eq.s32.totalorder %s17, 3
    %p54 = por %p52, %p53
    %p56 = scmp.ne.s32.totalorder %s39, %s55
    %p57 = scmp.eq.s32.totalorder %s17, 0
    %p58 = por %p56, %p57
    %s60 = sadd.s32 %s59, 1
    %p63 = scmp.eq.s32.totalorder %s11, 3
    %p64 = scmp.ne.s32.totalorder %s59, %s61
    %p65 = scmp.eq.s32.totalorder %s11, 0
    %p66 = por %p64, %p65
    %p67 = scmp.ne.s32.totalorder %s59, %s61
    %p68 = scmp.eq.s32.totalorder %s16, 3
    %p69 = por %p67, %p68
    %p70 = scmp.ne.s32.totalorder %s61, %s62
    %p71 = scmp.eq.s32.totalorder %s16, 0
    %p72 = por %p70, %p71
    %p73 = scmp.ne.s32.totalorder %s61, %s62
    %p74 = scmp.eq.s32.totalorder %s17, 3
    %p75 = por %p73, %p74
    %p77 = scmp.ne.s32.totalorder %s62, %s76
    %p78 = scmp.eq.s32.totalorder %s17, 0
    %p79 = por %p77, %p78
    %s81 = sadd.s32 %s80, 1
    %p84 = scmp.eq.s32.totalorder %s11, 3
    %p85 = scmp.ne.s32.totalorder %s80, %s82
    %p86 = scmp.eq.s32.totalorder %s11, 0
    %p87 = por %p85, %p86
    %p88 = scmp.ne.s32.totalorder %s80, %s82
    %p89 = scmp.eq.s32.totalorder %s16, 3
    %p90 = por %p88, %p89
    %p91 = scmp.ne.s32.totalorder %s82, %s83
    %p92 = scmp.eq.s32.totalorder %s16, 0
    %p93 = por %p91, %p92
    %p94 = scmp.ne.s32.totalorder %s82, %s83
    %p95 = scmp.eq.s32.totalorder %s17, 3
    %p96 = por %p94, %p95
    %p98 = scmp.ne.s32.totalorder %s83, %s97
    %p99 = scmp.eq.s32.totalorder %s17, 0
    %p100 = por %p98, %p99
    %s102 = sadd.s32 %s101, 1
    %p105 = scmp.eq.s32.totalorder %s11, 3
    %p106 = scmp.ne.s32.totalorder %s101, %s103
    %p107 = scmp.eq.s32.totalorder %s11, 0
    %p108 = por %p106, %p107
    %p109 = scmp.ne.s32.totalorder %s101, %s103
    %p110 = scmp.eq.s32.totalorder %s16, 3
    %p111 = por %p109, %p110
    %p112 = scmp.ne.s32.totalorder %s103, %s104
    %p113 = scmp.eq.s32.totalorder %s16, 0
    %p114 = por %p112, %p113
    %p115 = scmp.ne.s32.totalorder %s103, %s104
    %p116 = scmp.eq.s32.totalorder %s17, 3
    %p117 = por %p115, %p116
    %p119 = scmp.ne.s32.totalorder %s104, %s118
    %p120 = scmp.eq.s32.totalorder %s17, 0
    %p121 = por %p119, %p120
    %s123 = sadd.s32 %s122, 1
    %p126 = scmp.eq.s32.totalorder %s11, 3
    %p127 = scmp.ne.s32.totalorder %s122, %s124
    %p128 = scmp.eq.s32.totalorder %s11, 0
    %p129 = por %p127, %p128
    %p130 = scmp.ne.s32.totalorder %s122, %s124
    %p131 = scmp.eq.s32.totalorder %s16, 3
    %p132 = por %p130, %p131
    %p133 = scmp.ne.s32.totalorder %s124, %s125
    %p134 = scmp.eq.s32.totalorder %s16, 0
    %p135 = por %p133, %p134
    %p136 = scmp.ne.s32.totalorder %s124, %s125
    %p137 = scmp.eq.s32.totalorder %s17, 3
    %p138 = por %p136, %p137
    %p140 = scmp.ne.s32.totalorder %s125, %s139
    %p141 = scmp.eq.s32.totalorder %s17, 0
    %p142 = por %p140, %p141
    %s143 = ssub.s32 %s18, %s30
    %p144 = scmp.eq.s32.totalorder %s143, 0
    %s146 = sadd.s32 %s145, 1
    %s147 = scalar_select %p144, %s145, %s146
    %p150 = pneg %p144
    %p151 = scmp.eq.s32.totalorder %s11, 3
    %p152 = por %p150, %p151
    %p153 = scmp.ne.s32.totalorder %s145, %s148
    %p154 = scmp.eq.s32.totalorder %s11, 0
    %p155 = por %p153, %p154
    %p156 = scmp.ne.s32.totalorder %s145, %s148
    %p157 = scmp.eq.s32.totalorder %s16, 3
    %p158 = por %p156, %p157
    %p159 = scmp.ne.s32.totalorder %s148, %s149
    %p160 = scmp.eq.s32.totalorder %s16, 0
    %p161 = por %p159, %p160
    %p162 = scmp.ne.s32.totalorder %s148, %s149
    %p163 = scmp.eq.s32.totalorder %s17, 3
    %p164 = por %p162, %p163
    %p166 = scmp.ne.s32.totalorder %s149, %s165
    %p167 = scmp.eq.s32.totalorder %s17, 0
    %p168 = por %p166, %p167
    %p169 = scmp.le.s32.totalorder 1, %s11
    %p170 = scmp.lt.s32.totalorder %s11, 5
    %p171 = pnand %p169, %p170
    %p172 = pneg %p171
    // Predicated region
    $region9: #{double_attention_layer.2} parent=5 // pred_check
      _
    $region10: #{double_attention_layer.2} parent=5 // pred_check_branch
      %174 = sbr.rel (%p171) target = $region12
    $region11: #{double_attention_layer.2} parent=5 // pred_region
      %s175 = ssub.s32 %s11, 1
      // Predicated region
      $region13: #{double_attention_layer.2} parent=11 // pred_check
        %p176 = pneg %p72
      $region14: #{double_attention_layer.2} parent=11 // pred_check_branch
        %178 = sbr.rel (%p176) target = $region16
      $region15: #{double_attention_layer.2} parent=11 // pred_region
        _
      $region16: #{double_attention_layer.2} parent=11 // pred_fallthru
        _
      // Predicated region
      $region17: #{double_attention_layer.2} parent=11 // pred_check
        %p179 = pneg %p93
      $region18: #{double_attention_layer.2} parent=11 // pred_check_branch
        %181 = sbr.rel (%p179) target = $region20
      $region19: #{double_attention_layer.2} parent=11 // pred_region
        _
      $region20: #{double_attention_layer.2} parent=11 // pred_fallthru
        _
      // Predicated region
      $region21: #{double_attention_layer.2} parent=11 // pred_check
        %p182 = pneg %p114
      $region22: #{double_attention_layer.2} parent=11 // pred_check_branch
        %184 = sbr.rel (%p182) target = $region24
      $region23: #{double_attention_layer.2} parent=11 // pred_region
        _
      $region24: #{double_attention_layer.2} parent=11 // pred_fallthru
        _
      // Predicated region
      $region25: #{double_attention_layer.2} parent=11 // pred_check
        %p185 = pneg %p135
      $region26: #{double_attention_layer.2} parent=11 // pred_check_branch
        %187 = sbr.rel (%p185) target = $region28
      $region27: #{double_attention_layer.2} parent=11 // pred_region
        _
      $region28: #{double_attention_layer.2} parent=11 // pred_fallthru
        _
    $region12: #{double_attention_layer.2} parent=5 // pred_fallthru
      _
    %p188 = scmp.lt.s32.totalorder %s11, 4
    // Predicated region
    $region29: #{double_attention_layer.2} parent=5 // pred_check
      %p189 = pneg %p188
    $region30: #{double_attention_layer.2} parent=5 // pred_check_branch
      %191 = sbr.rel (%p189) target = $region32
    $region31: #{double_attention_layer.2} parent=5 // pred_region
      // Predicated region
      $region33: #{double_attention_layer.2} parent=31 // pred_check
        %p192 = pneg %p45
      $region34: #{double_attention_layer.2} parent=31 // pred_check_branch
        %194 = sbr.rel (%p192) target = $region36
      $region35: #{double_attention_layer.2} parent=31 // pred_region
        %s195 = smul.u32 16, %s19
        %p196 = scmp.lt.s32.totalorder %s18, 1
        %s197 = scalar_select %p196, %s18, 1
        %p198 = scmp.lt.s32.totalorder %s195, 31
        %s199 = scalar_select %p198, %s195, 31
        %s200 = smul.addr %s197, 32
        %s201 = sadd.s32 %s199, %s200
        %s202 = smul.addr %s201, 8
        %s203 = scalar_lea.vmem %s0, %s202
        %s204 = smul.u32 16, %s19
      $region36: #{double_attention_layer.2} parent=31 // pred_fallthru
        _
    $region32: #{double_attention_layer.2} parent=5 // pred_fallthru
      _
    %p205 = scmp.le.s32.totalorder 1, %s11
    %p206 = scmp.lt.s32.totalorder %s11, 5
    %p207 = pnand %p205, %p206
    %p208 = pneg %p207
    // Predicated region
    $region37: #{double_attention_layer.2} parent=5 // pred_check
      _
    $region38: #{double_attention_layer.2} parent=5 // pred_check_branch
      %210 = sbr.rel (%p207) target = $region40
    $region39: #{double_attention_layer.2} parent=5 // pred_region
      %s211 = ssub.s32 %s11, 1
      %s212 = smul.u32 16, %s21
      %p213 = scmp.lt.s32.totalorder %s20, 1
      %s214 = scalar_select %p213, %s20, 1
      %p215 = scmp.lt.s32.totalorder %s212, 31
      %s216 = scalar_select %p215, %s212, 31
      %s217 = smul.addr %s214, 32
      %s218 = sadd.s32 %s216, %s217
      %s219 = smul.addr %s218, 8
      %s220 = scalar_lea.vmem %s0, %s219
      %p221 = pneg %p51
      %p222 = pneg %p48
      %p223 = pneg %p72
      %p224 = pneg %p69
      %p225 = pneg %p93
      %p226 = pneg %p90
      %p227 = pneg %p114
      %p228 = pneg %p111
      %p229 = pneg %p135
      %p230 = pneg %p132
      %p231 = pneg %p161
      %p232 = pneg %p158
      %p233 = scmp.lt.s32.totalorder %s20, 1
      %s234 = scalar_select %p233, %s20, 1
      %s235 = smul.addr %s234, 16
      %s236 = smul.addr %s235, 4
      %s237 = scalar_lea.vmem %s5, %s236
      %s238 = smul.u32 16, %s21
      %p239 = scmp.lt.s32.totalorder %s20, 1
      %s240 = scalar_select %p239, %s20, 1
      %p241 = scmp.lt.s32.totalorder %s238, 31
      %s242 = scalar_select %p241, %s238, 31
      %s243 = smul.addr %s240, 32
      %s244 = sadd.s32 %s242, %s243
      %s245 = smul.addr %s244, 8
      %s246 = scalar_lea.vmem %s0, %s245
      %s247 = smul.u32 16, %s21
      %p248 = scmp.lt.s32.totalorder %s20, 1
      %s249 = scalar_select %p248, %s20, 1
      %s250 = smul.addr %s249, 16
      %s251 = smul.addr %s250, 4
      %s252 = scalar_lea.vmem %s5, %s251
      %p253 = scmp.eq.s32.totalorder %s21, 0
      // Predicated region
      $region41: #{double_attention_layer.2} parent=39 // pred_check
        %p254 = pneg %p253
      $region42: #{double_attention_layer.2} parent=39 // pred_check_branch
        %256 = sbr.rel (%p254) target = $region44
      $region43: #{double_attention_layer.2} parent=39 // pred_region
        %257 = vst [vmem:[#allocation2] sm:$0x1] -inf
        %258 = vst [vmem:[#allocation3] sm:$0x1] 0.0
        %259 = vst [vmem:[#allocation4] sm:$0xff] 0.0
        %260 = vst [vmem:[#allocation4 + $0x8] sm:$0xff] 0.0
        %261 = vst [vmem:[#allocation4 + $0x10] sm:$0xff] 0.0
        %262 = vst [vmem:[#allocation4 + $0x18] sm:$0xff] 0.0
        %263 = vst [vmem:[#allocation4 + $0x20] sm:$0xff] 0.0
        %264 = vst [vmem:[#allocation4 + $0x28] sm:$0xff] 0.0
        %265 = vst [vmem:[#allocation4 + $0x30] sm:$0xff] 0.0
        %266 = vst [vmem:[#allocation4 + $0x38] sm:$0xff] 0.0
        %267 = vst [vmem:[#allocation4 + $0x40] sm:$0xff] 0.0
        %268 = vst [vmem:[#allocation4 + $0x48] sm:$0xff] 0.0
        %269 = vst [vmem:[#allocation4 + $0x50] sm:$0xff] 0.0
        %270 = vst [vmem:[#allocation4 + $0x58] sm:$0xff] 0.0
        %271 = vst [vmem:[#allocation4 + $0x60] sm:$0xff] 0.0
        %272 = vst [vmem:[#allocation4 + $0x68] sm:$0xff] 0.0
        %273 = vst [vmem:[#allocation4 + $0x70] sm:$0xff] 0.0
        %274 = vst [vmem:[#allocation4 + $0x78] sm:$0xff] 0.0
      $region44: #{double_attention_layer.2} parent=39 // pred_fallthru
        _
      %v275 = vld [vmem:[%s246] sm:$0xff]
      %v276 = vld [vmem:[%s246 + $0x8] sm:$0xff]
      %v277 = vld [vmem:[%s246 + $0x10] sm:$0xff]
      %v278 = vld [vmem:[%s246 + $0x18] sm:$0xff]
      %v279 = vld [vmem:[%s246 + $0x20] sm:$0xff]
      %v280 = vld [vmem:[%s246 + $0x28] sm:$0xff]
      %v281 = vld [vmem:[%s246 + $0x30] sm:$0xff]
      %v282 = vld [vmem:[%s246 + $0x38] sm:$0xff]
      %v283 = vld [vmem:[%s246 + $0x40] sm:$0xff]
      %v284 = vld [vmem:[%s246 + $0x48] sm:$0xff]
      %v285 = vld [vmem:[%s246 + $0x50] sm:$0xff]
      %v286 = vld [vmem:[%s246 + $0x58] sm:$0xff]
      %v287 = vld [vmem:[%s246 + $0x60] sm:$0xff]
      %v288 = vld [vmem:[%s246 + $0x68] sm:$0xff]
      %v289 = vld [vmem:[%s246 + $0x70] sm:$0xff]
      %v290 = vld [vmem:[%s246 + $0x78] sm:$0xff]
      %v291 = vpack.c.bf16 %v276, %v275
      %v292 = vpack.c.bf16 %v278, %v277
      %v293 = vpack.c.bf16 %v280, %v279
      %v294 = vpack.c.bf16 %v282, %v281
      %v295 = vpack.c.bf16 %v284, %v283
      %v296 = vpack.c.bf16 %v286, %v285
      %v297 = vpack.c.bf16 %v288, %v287
      %v298 = vpack.c.bf16 %v290, %v289
      %v299 = vld [vmem:[%s3] sm:$0xf]
      %v300 = vld [vmem:[%s3 + $0x4] sm:$0xf]
      %v301 = vld [vmem:[%s3 + $0x8] sm:$0xf]
      %v302 = vld [vmem:[%s3 + $0xc] sm:$0xf]
      %v303 = vld [vmem:[%s3 + $0x10] sm:$0xf]
      %v304 = vld [vmem:[%s3 + $0x14] sm:$0xf]
      %v305 = vld [vmem:[%s3 + $0x18] sm:$0xf]
      %v306 = vld [vmem:[%s3 + $0x1c] sm:$0xf]
      %v307 = vld [vmem:[%s3 + $0x20] sm:$0xf]
      %v308 = vld [vmem:[%s3 + $0x24] sm:$0xf]
      %v309 = vld [vmem:[%s3 + $0x28] sm:$0xf]
      %v310 = vld [vmem:[%s3 + $0x2c] sm:$0xf]
      %v311 = vld [vmem:[%s3 + $0x30] sm:$0xf]
      %v312 = vld [vmem:[%s3 + $0x34] sm:$0xf]
      %v313 = vld [vmem:[%s3 + $0x38] sm:$0xf]
      %v314 = vld [vmem:[%s3 + $0x3c] sm:$0xf]
      %v315 = vld [vmem:[%s4] sm:$0x1]
      %v317 = vperm.slane %v315, 0
      %v335 = vunpack.c.l.b16 %v299
      %v336 = vunpack.c.l.b16 %v300
      %v337 = vunpack.c.l.b16 %v301
      %v338 = vunpack.c.l.b16 %v302
      %v339 = vunpack.c.l.b16 %v303
      %v340 = vunpack.c.l.b16 %v304
      %v341 = vunpack.c.l.b16 %v305
      %v342 = vunpack.c.l.b16 %v306
      %v343 = vunpack.c.l.b16 %v307
      %v344 = vunpack.c.l.b16 %v308
      %v345 = vunpack.c.l.b16 %v309
      %v346 = vunpack.c.l.b16 %v310
      %v347 = vunpack.c.l.b16 %v311
      %v348 = vunpack.c.l.b16 %v312
      %v349 = vunpack.c.l.b16 %v313
      %v350 = vunpack.c.l.b16 %v314
      %v351 = vpack.c.b16 %v336, %v335
      %v352 = vpack.c.b16 %v338, %v337
      %v353 = vpack.c.b16 %v340, %v339
      %v354 = vpack.c.b16 %v342, %v341
      %v355 = vpack.c.b16 %v344, %v343
      %v356 = vpack.c.b16 %v346, %v345
      %v357 = vpack.c.b16 %v348, %v347
      %v358 = vpack.c.b16 %v350, %v349
      %367 = vmatpush.bf16.msra.mxu0 %v358
      %368 = vmatpush.bf16.msra.mxu0 %v357
      %369 = vmatpush.bf16.msra.mxu0 %v356
      %370 = vmatpush.bf16.msra.mxu0 %v355
      %371 = vmatpush.bf16.msra.mxu0 %v354
      %372 = vmatpush.bf16.msra.mxu0 %v353
      %373 = vmatpush.bf16.msra.mxu0 %v352
      %374 = vmatpush.bf16.msra.mxu0 %v351
      %375 = vmatmul.bf16.gmra.mxu0 %v291
      %v376 = vpop.f32.mrf.mxu0
      %v377 = vadd.f32 %v317, %v376
      %v378 = vpop.f32.mrf.mxu0
      %v379 = vadd.f32 %v317, %v378
      %380 = vmatmul.bf16.gmra.mxu0 %v292
      %v381 = vpop.f32.mrf.mxu0
      %v382 = vadd.f32 %v317, %v381
      %v383 = vpop.f32.mrf.mxu0
      %v384 = vadd.f32 %v317, %v383
      %385 = vmatmul.bf16.gmra.mxu0 %v293
      %v386 = vpop.f32.mrf.mxu0
      %v387 = vadd.f32 %v317, %v386
      %v388 = vpop.f32.mrf.mxu0
      %v389 = vadd.f32 %v317, %v388
      %390 = vmatmul.bf16.gmra.mxu0 %v294
      %v391 = vpop.f32.mrf.mxu0
      %v392 = vadd.f32 %v317, %v391
      %v393 = vpop.f32.mrf.mxu0
      %v394 = vadd.f32 %v317, %v393
      %395 = vmatmul.bf16.gmra.mxu0 %v295
      %v396 = vpop.f32.mrf.mxu0
      %v397 = vadd.f32 %v317, %v396
      %v398 = vpop.f32.mrf.mxu0
      %v399 = vadd.f32 %v317, %v398
      %400 = vmatmul.bf16.gmra.mxu0 %v296
      %v401 = vpop.f32.mrf.mxu0
      %v402 = vadd.f32 %v317, %v401
      %v403 = vpop.f32.mrf.mxu0
      %v404 = vadd.f32 %v317, %v403
      %405 = vmatmul.bf16.gmra.mxu0 %v297
      %v406 = vpop.f32.mrf.mxu0
      %v407 = vadd.f32 %v317, %v406
      %v408 = vpop.f32.mrf.mxu0
      %v409 = vadd.f32 %v317, %v408
      %410 = vmatmul.bf16.gmra.mxu0 %v298
      %v411 = vpop.f32.mrf.mxu0
      %v412 = vadd.f32 %v317, %v411
      %v413 = vpop.f32.mrf.mxu0
      %v414 = vadd.f32 %v317, %v413
      %415 = vdwg.mxu0
      %v416 = vld [vmem:[#allocation2] sm:$0x1]
      %v417 = vmax.f32 %v377, %v387
      %v418 = vmax.f32 %v379, %v389
      %v419 = vmax.f32 %v382, %v392
      %v420 = vmax.f32 %v384, %v394
      %v421 = vmax.f32 %v417, %v397
      %v422 = vmax.f32 %v418, %v399
      %v423 = vmax.f32 %v419, %v402
      %v424 = vmax.f32 %v420, %v404
      %v425 = vmax.f32 %v421, %v407
      %v426 = vmax.f32 %v422, %v409
      %v427 = vmax.f32 %v423, %v412
      %v428 = vmax.f32 %v424, %v414
      %v429 = vmax.f32 %v425, %v426
      %v430 = vmax.f32 %v427, %v428
      %v431 = vmax.f32 %v429, %v430
      %v432 = vrot.slane %v431, 4
      %v433 = vmax.f32 %v431, %v432
      %v434 = vrot.slane %v433, 2
      %v435 = vmax.f32 %v433, %v434
      %v436 = vrot.slane %v435, 1
      %v437 = vmax.f32 %v435, %v436
      %v438 = vmax.f32 %v416, %v437
      %v439 = vsub.f32 %v416, %v438
      %v440 = vmul.f32 %v439, 1.442695
      %v441 = vpow.pop %v440
      %v443 = vperm.slane %v438, 0
      %v445 = vsub.f32 %v377, %v443
      %v446 = vsub.f32 %v379, %v443
      %v447 = vsub.f32 %v382, %v443
      %v448 = vsub.f32 %v384, %v443
      %v449 = vsub.f32 %v387, %v443
      %v450 = vsub.f32 %v389, %v443
      %v451 = vsub.f32 %v392, %v443
      %v452 = vsub.f32 %v394, %v443
      %v453 = vsub.f32 %v397, %v443
      %v454 = vsub.f32 %v399, %v443
      %v455 = vsub.f32 %v402, %v443
      %v456 = vsub.f32 %v404, %v443
      %v457 = vsub.f32 %v407, %v443
      %v458 = vsub.f32 %v409, %v443
      %v459 = vsub.f32 %v412, %v443
      %v460 = vsub.f32 %v414, %v443
      %v461 = vmul.f32 %v445, 1.442695
      %v462 = vpow.pop %v461
      %v463 = vmul.f32 %v446, 1.442695
      %v464 = vpow.pop %v463
      %v465 = vmul.f32 %v447, 1.442695
      %v466 = vpow.pop %v465
      %v467 = vmul.f32 %v448, 1.442695
      %v468 = vpow.pop %v467
      %v469 = vmul.f32 %v449, 1.442695
      %v470 = vpow.pop %v469
      %v471 = vmul.f32 %v450, 1.442695
      %v472 = vpow.pop %v471
      %v473 = vmul.f32 %v451, 1.442695
      %v474 = vpow.pop %v473
      %v475 = vmul.f32 %v452, 1.442695
      %v476 = vpow.pop %v475
      %v477 = vmul.f32 %v453, 1.442695
      %v478 = vpow.pop %v477
      %v479 = vmul.f32 %v454, 1.442695
      %v480 = vpow.pop %v479
      %v481 = vmul.f32 %v455, 1.442695
      %v482 = vpow.pop %v481
      %v483 = vmul.f32 %v456, 1.442695
      %v484 = vpow.pop %v483
      %v485 = vmul.f32 %v457, 1.442695
      %v486 = vpow.pop %v485
      %v487 = vmul.f32 %v458, 1.442695
      %v488 = vpow.pop %v487
      %v489 = vmul.f32 %v459, 1.442695
      %v490 = vpow.pop %v489
      %v491 = vmul.f32 %v460, 1.442695
      %v492 = vpow.pop %v491
      %v493 = vld [vmem:[%s1] sm:$0xf]
      %v494 = vld [vmem:[%s1 + $0x4] sm:$0xf]
      %v495 = vld [vmem:[%s1 + $0x8] sm:$0xf]
      %v496 = vld [vmem:[%s1 + $0xc] sm:$0xf]
      %v497 = vld [vmem:[%s1 + $0x10] sm:$0xf]
      %v498 = vld [vmem:[%s1 + $0x14] sm:$0xf]
      %v499 = vld [vmem:[%s1 + $0x18] sm:$0xf]
      %v500 = vld [vmem:[%s1 + $0x1c] sm:$0xf]
      %v501 = vld [vmem:[%s1 + $0x20] sm:$0xf]
      %v502 = vld [vmem:[%s1 + $0x24] sm:$0xf]
      %v503 = vld [vmem:[%s1 + $0x28] sm:$0xf]
      %v504 = vld [vmem:[%s1 + $0x2c] sm:$0xf]
      %v505 = vld [vmem:[%s1 + $0x30] sm:$0xf]
      %v506 = vld [vmem:[%s1 + $0x34] sm:$0xf]
      %v507 = vld [vmem:[%s1 + $0x38] sm:$0xf]
      %v508 = vld [vmem:[%s1 + $0x3c] sm:$0xf]
      %v509 = vld [vmem:[%s2] sm:$0x1]
      %v511 = vperm.slane %v509, 0
      %v529 = vunpack.c.l.b16 %v493
      %v530 = vunpack.c.l.b16 %v494
      %v531 = vunpack.c.l.b16 %v495
      %v532 = vunpack.c.l.b16 %v496
      %v533 = vunpack.c.l.b16 %v497
      %v534 = vunpack.c.l.b16 %v498
      %v535 = vunpack.c.l.b16 %v499
      %v536 = vunpack.c.l.b16 %v500
      %v537 = vunpack.c.l.b16 %v501
      %v538 = vunpack.c.l.b16 %v502
      %v539 = vunpack.c.l.b16 %v503
      %v540 = vunpack.c.l.b16 %v504
      %v541 = vunpack.c.l.b16 %v505
      %v542 = vunpack.c.l.b16 %v506
      %v543 = vunpack.c.l.b16 %v507
      %v544 = vunpack.c.l.b16 %v508
      %v545 = vpack.c.b16 %v530, %v529
      %v546 = vpack.c.b16 %v532, %v531
      %v547 = vpack.c.b16 %v534, %v533
      %v548 = vpack.c.b16 %v536, %v535
      %v549 = vpack.c.b16 %v538, %v537
      %v550 = vpack.c.b16 %v540, %v539
      %v551 = vpack.c.b16 %v542, %v541
      %v552 = vpack.c.b16 %v544, %v543
      %561 = vmatpush.bf16.msra.mxu0 %v552
      %562 = vmatpush.bf16.msra.mxu0 %v551
      %563 = vmatpush.bf16.msra.mxu0 %v550
      %564 = vmatpush.bf16.msra.mxu0 %v549
      %565 = vmatpush.bf16.msra.mxu0 %v548
      %566 = vmatpush.bf16.msra.mxu0 %v547
      %567 = vmatpush.bf16.msra.mxu0 %v546
      %568 = vmatpush.bf16.msra.mxu0 %v545
      %569 = vmatmul.bf16.gmra.mxu0 %v291
      %v570 = vpop.f32.mrf.mxu0
      %v571 = vadd.f32 %v511, %v570
      %v572 = vpop.f32.mrf.mxu0
      %v573 = vadd.f32 %v511, %v572
      %574 = vmatmul.bf16.gmra.mxu0 %v292
      %v575 = vpop.f32.mrf.mxu0
      %v576 = vadd.f32 %v511, %v575
      %v577 = vpop.f32.mrf.mxu0
      %v578 = vadd.f32 %v511, %v577
      %579 = vmatmul.bf16.gmra.mxu0 %v293
      %v580 = vpop.f32.mrf.mxu0
      %v581 = vadd.f32 %v511, %v580
      %v582 = vpop.f32.mrf.mxu0
      %v583 = vadd.f32 %v511, %v582
      %584 = vmatmul.bf16.gmra.mxu0 %v294
      %v585 = vpop.f32.mrf.mxu0
      %v586 = vadd.f32 %v511, %v585
      %v587 = vpop.f32.mrf.mxu0
      %v588 = vadd.f32 %v511, %v587
      %589 = vmatmul.bf16.gmra.mxu0 %v295
      %v590 = vpop.f32.mrf.mxu0
      %v591 = vadd.f32 %v511, %v590
      %v592 = vpop.f32.mrf.mxu0
      %v593 = vadd.f32 %v511, %v592
      %594 = vmatmul.bf16.gmra.mxu0 %v296
      %v595 = vpop.f32.mrf.mxu0
      %v596 = vadd.f32 %v511, %v595
      %v597 = vpop.f32.mrf.mxu0
      %v598 = vadd.f32 %v511, %v597
      %599 = vmatmul.bf16.gmra.mxu0 %v297
      %v600 = vpop.f32.mrf.mxu0
      %v601 = vadd.f32 %v511, %v600
      %v602 = vpop.f32.mrf.mxu0
      %v603 = vadd.f32 %v511, %v602
      %604 = vmatmul.bf16.gmra.mxu0 %v298
      %v605 = vpop.f32.mrf.mxu0
      %v606 = vadd.f32 %v511, %v605
      %v607 = vpop.f32.mrf.mxu0
      %v608 = vadd.f32 %v511, %v607
      %609 = vdwg.mxu0
      %v610 = vld [vmem:[#allocation3] sm:$0x1]
      %v611 = vmul.f32 %v610, %v441
      %v612 = vadd.f32 %v462, %v464
      %v613 = vadd.f32 %v612, %v466
      %v614 = vadd.f32 %v613, %v468
      %v615 = vadd.f32 %v614, %v470
      %v616 = vadd.f32 %v615, %v472
      %v617 = vadd.f32 %v616, %v474
      %v618 = vadd.f32 %v617, %v476
      %v619 = vadd.f32 %v618, %v478
      %v620 = vadd.f32 %v619, %v480
      %v621 = vadd.f32 %v620, %v482
      %v622 = vadd.f32 %v621, %v484
      %v623 = vadd.f32 %v622, %v486
      %v624 = vadd.f32 %v623, %v488
      %v625 = vadd.f32 %v624, %v490
      %v626 = vadd.f32 %v625, %v492
      %v627 = vrot.slane %v626, 4
      %v628 = vadd.f32 %v626, %v627
      %v629 = vrot.slane %v628, 2
      %v630 = vadd.f32 %v628, %v629
      %v631 = vrot.slane %v630, 1
      %v632 = vadd.f32 %v630, %v631
      %v633 = vadd.f32 %v611, %v632
      %634 = vst [vmem:[#allocation3] sm:$0x1] %v633
      %v635 = vld [vmem:[#allocation4] sm:$0xff]
      %v636 = vld [vmem:[#allocation4 + $0x8] sm:$0xff]
      %v637 = vld [vmem:[#allocation4 + $0x10] sm:$0xff]
      %v638 = vld [vmem:[#allocation4 + $0x18] sm:$0xff]
      %v639 = vld [vmem:[#allocation4 + $0x20] sm:$0xff]
      %v640 = vld [vmem:[#allocation4 + $0x28] sm:$0xff]
      %v641 = vld [vmem:[#allocation4 + $0x30] sm:$0xff]
      %v642 = vld [vmem:[#allocation4 + $0x38] sm:$0xff]
      %v643 = vld [vmem:[#allocation4 + $0x40] sm:$0xff]
      %v644 = vld [vmem:[#allocation4 + $0x48] sm:$0xff]
      %v645 = vld [vmem:[#allocation4 + $0x50] sm:$0xff]
      %v646 = vld [vmem:[#allocation4 + $0x58] sm:$0xff]
      %v647 = vld [vmem:[#allocation4 + $0x60] sm:$0xff]
      %v648 = vld [vmem:[#allocation4 + $0x68] sm:$0xff]
      %v649 = vld [vmem:[#allocation4 + $0x70] sm:$0xff]
      %v650 = vld [vmem:[#allocation4 + $0x78] sm:$0xff]
      %v652 = vperm.slane %v441, 0
      %v654 = vmul.f32 %v635, %v652
      %v655 = vmul.f32 %v636, %v652
      %v656 = vmul.f32 %v637, %v652
      %v657 = vmul.f32 %v638, %v652
      %v658 = vmul.f32 %v639, %v652
      %v659 = vmul.f32 %v640, %v652
      %v660 = vmul.f32 %v641, %v652
      %v661 = vmul.f32 %v642, %v652
      %v662 = vmul.f32 %v643, %v652
      %v663 = vmul.f32 %v644, %v652
      %v664 = vmul.f32 %v645, %v652
      %v665 = vmul.f32 %v646, %v652
      %v666 = vmul.f32 %v647, %v652
      %v667 = vmul.f32 %v648, %v652
      %v668 = vmul.f32 %v649, %v652
      %v669 = vmul.f32 %v650, %v652
      %v670 = vpack.c.bf16 %v573, %v571
      %v671 = vpack.c.bf16 %v578, %v576
      %v672 = vpack.c.bf16 %v583, %v581
      %v673 = vpack.c.bf16 %v588, %v586
      %v674 = vpack.c.bf16 %v593, %v591
      %v675 = vpack.c.bf16 %v598, %v596
      %v676 = vpack.c.bf16 %v603, %v601
      %v677 = vpack.c.bf16 %v608, %v606
      %v678 = vpack.c.bf16 %v464, %v462
      %v679 = vpack.c.bf16 %v468, %v466
      %v680 = vpack.c.bf16 %v472, %v470
      %v681 = vpack.c.bf16 %v476, %v474
      %v682 = vpack.c.bf16 %v480, %v478
      %v683 = vpack.c.bf16 %v484, %v482
      %v684 = vpack.c.bf16 %v488, %v486
      %v685 = vpack.c.bf16 %v492, %v490
      %686 = vxpose.xlu0.c.b16.start [1/8] %v670, 128
      %687 = vxpose.xlu0.c.b16.cont [2/8] %v671, 128
      %688 = vxpose.xlu0.c.b16.cont [3/8] %v672, 128
      %689 = vxpose.xlu0.c.b16.cont [4/8] %v673, 128
      %690 = vxpose.xlu0.c.b16.cont [5/8] %v674, 128
      %691 = vxpose.xlu0.c.b16.cont [6/8] %v675, 128
      %692 = vxpose.xlu0.c.b16.cont [7/8] %v676, 128
      %693 = vxpose.xlu0.c.b16.end [8/8] %v677, 128
      %v694 = vpop.trf.xlu0
      %v695 = vpop.trf.xlu0
      %v696 = vpop.trf.xlu0
      %v697 = vpop.trf.xlu0
      %v698 = vpop.trf.xlu0
      %v699 = vpop.trf.xlu0
      %v700 = vpop.trf.xlu0
      %v701 = vpop.trf.xlu0
      %702 = vmatpush.bf16.msra.mxu0 %v685
      %703 = vmatpush.bf16.msra.mxu0 %v684
      %704 = vmatpush.bf16.msra.mxu0 %v683
      %705 = vmatpush.bf16.msra.mxu0 %v682
      %706 = vmatpush.bf16.msra.mxu0 %v681
      %707 = vmatpush.bf16.msra.mxu0 %v680
      %708 = vmatpush.bf16.msra.mxu0 %v679
      %709 = vmatpush.bf16.msra.mxu0 %v678
      %710 = vmatmul.bf16.gmra.mxu0 %v694
      %v711 = vpop.f32.mrf.mxu0
      %v712 = vadd.f32 0.0, %v711
      %v713 = vpop.f32.mrf.mxu0
      %v714 = vadd.f32 0.0, %v713
      %715 = vmatmul.bf16.gmra.mxu0 %v695
      %v716 = vpop.f32.mrf.mxu0
      %v717 = vadd.f32 0.0, %v716
      %v718 = vpop.f32.mrf.mxu0
      %v719 = vadd.f32 0.0, %v718
      %720 = vmatmul.bf16.gmra.mxu0 %v696
      %v721 = vpop.f32.mrf.mxu0
      %v722 = vadd.f32 0.0, %v721
      %v723 = vpop.f32.mrf.mxu0
      %v724 = vadd.f32 0.0, %v723
      %725 = vmatmul.bf16.gmra.mxu0 %v697
      %v726 = vpop.f32.mrf.mxu0
      %v727 = vadd.f32 0.0, %v726
      %v728 = vpop.f32.mrf.mxu0
      %v729 = vadd.f32 0.0, %v728
      %730 = vmatmul.bf16.gmra.mxu0 %v698
      %v731 = vpop.f32.mrf.mxu0
      %v732 = vadd.f32 0.0, %v731
      %v733 = vpop.f32.mrf.mxu0
      %v734 = vadd.f32 0.0, %v733
      %735 = vmatmul.bf16.gmra.mxu0 %v699
      %v736 = vpop.f32.mrf.mxu0
      %v737 = vadd.f32 0.0, %v736
      %v738 = vpop.f32.mrf.mxu0
      %v739 = vadd.f32 0.0, %v738
      %740 = vmatmul.bf16.gmra.mxu0 %v700
      %v741 = vpop.f32.mrf.mxu0
      %v742 = vadd.f32 0.0, %v741
      %v743 = vpop.f32.mrf.mxu0
      %v744 = vadd.f32 0.0, %v743
      %745 = vmatmul.bf16.gmra.mxu0 %v701
      %v746 = vpop.f32.mrf.mxu0
      %v747 = vadd.f32 0.0, %v746
      %v748 = vpop.f32.mrf.mxu0
      %v749 = vadd.f32 0.0, %v748
      %750 = vdwg.mxu0
      %v751 = vadd.f32 %v654, %v712
      %v752 = vadd.f32 %v655, %v714
      %v753 = vadd.f32 %v656, %v717
      %v754 = vadd.f32 %v657, %v719
      %v755 = vadd.f32 %v658, %v722
      %v756 = vadd.f32 %v659, %v724
      %v757 = vadd.f32 %v660, %v727
      %v758 = vadd.f32 %v661, %v729
      %v759 = vadd.f32 %v662, %v732
      %v760 = vadd.f32 %v663, %v734
      %v761 = vadd.f32 %v664, %v737
      %v762 = vadd.f32 %v665, %v739
      %v763 = vadd.f32 %v666, %v742
      %v764 = vadd.f32 %v667, %v744
      %v765 = vadd.f32 %v668, %v747
      %v766 = vadd.f32 %v669, %v749
      %767 = vst [vmem:[#allocation4] sm:$0xff] %v751
      %768 = vst [vmem:[#allocation4 + $0x8] sm:$0xff] %v752
      %769 = vst [vmem:[#allocation4 + $0x10] sm:$0xff] %v753
      %770 = vst [vmem:[#allocation4 + $0x18] sm:$0xff] %v754
      %771 = vst [vmem:[#allocation4 + $0x20] sm:$0xff] %v755
      %772 = vst [vmem:[#allocation4 + $0x28] sm:$0xff] %v756
      %773 = vst [vmem:[#allocation4 + $0x30] sm:$0xff] %v757
      %774 = vst [vmem:[#allocation4 + $0x38] sm:$0xff] %v758
      %775 = vst [vmem:[#allocation4 + $0x40] sm:$0xff] %v759
      %776 = vst [vmem:[#allocation4 + $0x48] sm:$0xff] %v760
      %777 = vst [vmem:[#allocation4 + $0x50] sm:$0xff] %v761
      %778 = vst [vmem:[#allocation4 + $0x58] sm:$0xff] %v762
      %779 = vst [vmem:[#allocation4 + $0x60] sm:$0xff] %v763
      %780 = vst [vmem:[#allocation4 + $0x68] sm:$0xff] %v764
      %781 = vst [vmem:[#allocation4 + $0x70] sm:$0xff] %v765
      %782 = vst [vmem:[#allocation4 + $0x78] sm:$0xff] %v766
      %783 = vst [vmem:[#allocation2] sm:$0x1] %v438
      %p784 = scmp.eq.s32.totalorder %s21, 1
      // Predicated region
      $region45: #{double_attention_layer.2} parent=39 // pred_check
        %p785 = pneg %p784
      $region46: #{double_attention_layer.2} parent=39 // pred_check_branch
        %787 = sbr.rel (%p785) target = $region48
      $region47: #{double_attention_layer.2} parent=39 // pred_region
        %v788 = vld [vmem:[#allocation4] sm:$0xff]
        %v789 = vld [vmem:[#allocation4 + $0x8] sm:$0xff]
        %v790 = vld [vmem:[#allocation4 + $0x10] sm:$0xff]
        %v791 = vld [vmem:[#allocation4 + $0x18] sm:$0xff]
        %v792 = vld [vmem:[#allocation4 + $0x20] sm:$0xff]
        %v793 = vld [vmem:[#allocation4 + $0x28] sm:$0xff]
        %v794 = vld [vmem:[#allocation4 + $0x30] sm:$0xff]
        %v795 = vld [vmem:[#allocation4 + $0x38] sm:$0xff]
        %v796 = vld [vmem:[#allocation4 + $0x40] sm:$0xff]
        %v797 = vld [vmem:[#allocation4 + $0x48] sm:$0xff]
        %v798 = vld [vmem:[#allocation4 + $0x50] sm:$0xff]
        %v799 = vld [vmem:[#allocation4 + $0x58] sm:$0xff]
        %v800 = vld [vmem:[#allocation4 + $0x60] sm:$0xff]
        %v801 = vld [vmem:[#allocation4 + $0x68] sm:$0xff]
        %v802 = vld [vmem:[#allocation4 + $0x70] sm:$0xff]
        %v803 = vld [vmem:[#allocation4 + $0x78] sm:$0xff]
        %v804 = vld [vmem:[#allocation3] sm:$0x1]
        %v805 = vrcp.pop %v804
        %v807 = vperm.slane %v805, 0
        %v809 = vmul.f32 %v788, %v807
        %v810 = vmul.f32 %v789, %v807
        %v811 = vmul.f32 %v790, %v807
        %v812 = vmul.f32 %v791, %v807
        %v813 = vmul.f32 %v792, %v807
        %v814 = vmul.f32 %v793, %v807
        %v815 = vmul.f32 %v794, %v807
        %v816 = vmul.f32 %v795, %v807
        %v817 = vmul.f32 %v796, %v807
        %v818 = vmul.f32 %v797, %v807
        %v819 = vmul.f32 %v798, %v807
        %v820 = vmul.f32 %v799, %v807
        %v821 = vmul.f32 %v800, %v807
        %v822 = vmul.f32 %v801, %v807
        %v823 = vmul.f32 %v802, %v807
        %v824 = vmul.f32 %v803, %v807
        %825 = vxpose.xlu0.b32.start [1/16] %v809, 128
        %826 = vxpose.xlu0.b32.cont [2/16] %v810, 128
        %827 = vxpose.xlu0.b32.cont [3/16] %v811, 128
        %828 = vxpose.xlu0.b32.cont [4/16] %v812, 128
        %829 = vxpose.xlu0.b32.cont [5/16] %v813, 128
        %830 = vxpose.xlu0.b32.cont [6/16] %v814, 128
        %831 = vxpose.xlu0.b32.cont [7/16] %v815, 128
        %832 = vxpose.xlu0.b32.cont [8/16] %v816, 128
        %833 = vxpose.xlu0.b32.cont [9/16] %v817, 128
        %834 = vxpose.xlu0.b32.cont [10/16] %v818, 128
        %835 = vxpose.xlu0.b32.cont [11/16] %v819, 128
        %836 = vxpose.xlu0.b32.cont [12/16] %v820, 128
        %837 = vxpose.xlu0.b32.cont [13/16] %v821, 128
        %838 = vxpose.xlu0.b32.cont [14/16] %v822, 128
        %839 = vxpose.xlu0.b32.cont [15/16] %v823, 128
        %840 = vxpose.xlu0.b32.end [16/16] %v824, 128
        %v841 = vpop.trf.xlu0
        %v842 = vpop.trf.xlu0
        %v843 = vpop.trf.xlu0
        %v844 = vpop.trf.xlu0
        %v845 = vpop.trf.xlu0
        %v846 = vpop.trf.xlu0
        %v847 = vpop.trf.xlu0
        %v848 = vpop.trf.xlu0
        %v849 = vpop.trf.xlu0
        %v850 = vpop.trf.xlu0
        %v851 = vpop.trf.xlu0
        %v852 = vpop.trf.xlu0
        %v853 = vpop.trf.xlu0
        %v854 = vpop.trf.xlu0
        %v855 = vpop.trf.xlu0
        %v856 = vpop.trf.xlu0
        %v857 = vpack.c.bf16 %v841, %v841
        %v858 = vpack.c.bf16 %v842, %v842
        %v859 = vpack.c.bf16 %v843, %v843
        %v860 = vpack.c.bf16 %v844, %v844
        %v861 = vpack.c.bf16 %v845, %v845
        %v862 = vpack.c.bf16 %v846, %v846
        %v863 = vpack.c.bf16 %v847, %v847
        %v864 = vpack.c.bf16 %v848, %v848
        %v865 = vpack.c.bf16 %v849, %v849
        %v866 = vpack.c.bf16 %v850, %v850
        %v867 = vpack.c.bf16 %v851, %v851
        %v868 = vpack.c.bf16 %v852, %v852
        %v869 = vpack.c.bf16 %v853, %v853
        %v870 = vpack.c.bf16 %v854, %v854
        %v871 = vpack.c.bf16 %v855, %v855
        %v872 = vpack.c.bf16 %v856, %v856
        %873 = vst [vmem:[%s252] sm:$0xf] %v857
        %874 = vst [vmem:[%s252 + $0x4] sm:$0xf] %v858
        %875 = vst [vmem:[%s252 + $0x8] sm:$0xf] %v859
        %876 = vst [vmem:[%s252 + $0xc] sm:$0xf] %v860
        %877 = vst [vmem:[%s252 + $0x10] sm:$0xf] %v861
        %878 = vst [vmem:[%s252 + $0x14] sm:$0xf] %v862
        %879 = vst [vmem:[%s252 + $0x18] sm:$0xf] %v863
        %880 = vst [vmem:[%s252 + $0x1c] sm:$0xf] %v864
        %881 = vst [vmem:[%s252 + $0x20] sm:$0xf] %v865
        %882 = vst [vmem:[%s252 + $0x24] sm:$0xf] %v866
        %883 = vst [vmem:[%s252 + $0x28] sm:$0xf] %v867
        %884 = vst [vmem:[%s252 + $0x2c] sm:$0xf] %v868
        %885 = vst [vmem:[%s252 + $0x30] sm:$0xf] %v869
        %886 = vst [vmem:[%s252 + $0x34] sm:$0xf] %v870
        %887 = vst [vmem:[%s252 + $0x38] sm:$0xf] %v871
        %888 = vst [vmem:[%s252 + $0x3c] sm:$0xf] %v872
      $region48: #{double_attention_layer.2} parent=39 // pred_fallthru
        _
      %p889 = scmp.lt.s32.totalorder %s20, 1
      %s890 = scalar_select %p889, %s20, 1
      %s891 = smul.addr %s890, 16
      %s892 = smul.addr %s891, 4
      %s893 = scalar_lea.vmem %s5, %s892
      // Predicated region
      $region49: #{double_attention_layer.2} parent=39 // pred_check
        %p894 = pneg %p158
      $region50: #{double_attention_layer.2} parent=39 // pred_check_branch
        %896 = sbr.rel (%p894) target = $region52
      $region51: #{double_attention_layer.2} parent=39 // pred_region
        _
      $region52: #{double_attention_layer.2} parent=39 // pred_fallthru
        _
    $region40: #{double_attention_layer.2} parent=5 // pred_fallthru
      _
    %p897 = scmp.le.s32.totalorder 2, %s11
    // Predicated region
    $region53: #{double_attention_layer.2} parent=5 // pred_check
      %p898 = pneg %p897
    $region54: #{double_attention_layer.2} parent=5 // pred_check_branch
      %900 = sbr.rel (%p898) target = $region56
    $region55: #{double_attention_layer.2} parent=5 // pred_region
      %s901 = ssub.s32 %s11, 2
      // Predicated region
      $region57: #{double_attention_layer.2} parent=55 // pred_check
        %p902 = pneg %p164
      $region58: #{double_attention_layer.2} parent=55 // pred_check_branch
        %904 = sbr.rel (%p902) target = $region60
      $region59: #{double_attention_layer.2} parent=55 // pred_region
        %p905 = scmp.lt.s32.totalorder %s22, 1
        %s906 = scalar_select %p905, %s22, 1
        %s907 = smul.addr %s906, 16
        %s908 = smul.addr %s907, 4
        %s909 = scalar_lea.vmem %s5, %s908
      $region60: #{double_attention_layer.2} parent=55 // pred_fallthru
        _
    $region56: #{double_attention_layer.2} parent=5 // pred_fallthru
      _
  $region6: #{double_attention_layer.2} parent=0 // loop_footer
    %s15 = sadd.s32 1, %s11
  $region7: #{double_attention_layer.2} parent=0 // loop_footer_branch
    %10 = sbr.rel target = $region3
  $region8: #{double_attention_layer.2} parent=0 // loop_exit
    _

</llo_original>
